<compile_context>
chip_gen: v7x
topology: tpu7x:2x2x1
jax: 0.10.0
libtpu: 0.0.40
codegen_flags: <defaults>
</compile_context>

<pallas_src>
import math
from functools import partial

import jax
import jax.numpy as jnp
from jax import lax
from jax.experimental import pallas as pl
from jax.experimental.pallas import tpu as pltpu


def _softmax_f32(x):
    m = jnp.max(x, axis=-1, keepdims=True)
    e = jnp.exp(x - m)
    return e * pl.reciprocal(jnp.sum(e, axis=-1, keepdims=True), approx=True)


def _nt_matmul(a, b):
    """a (M, K) @ b (N, K)^T -> (M, N), f32 accumulation, no explicit transpose."""
    return lax.dot_general(a, b, (((1,), (1,)), ((), ())),
                           preferred_element_type=jnp.float32)


def dual_attention_kernel(n_sa, n_ra, hd, n_rel, rpd, d_sa, d_ra,
                          q_sa_ref, k_sa_ref, v_sa_ref,
                          q_at_ref, k_at_ref, sv_ref,
                          q_rl_ref, k_rl_ref,
                          wr_ref, wo_sa_ref, wo_ra_ref,
                          out_ref, sa_sc_ref, ra_sc_ref, rel_ref,
                          sa_slab, ra_slab):
    f32, bf16 = jnp.float32, jnp.bfloat16

    q_sa = q_sa_ref[0]     # (TQ, d_sa)       bf16, attn scale pre-folded into Wq
    k_sa = k_sa_ref[0]     # (L,  d_sa)       bf16
    v_sa = v_sa_ref[0]     # (L,  d_sa)       bf16
    q_at = q_at_ref[0]     # (TQ, d_ra)       bf16, attn scale pre-folded
    k_at = k_at_ref[0]     # (L,  d_ra)       bf16
    sv = sv_ref[0]         # (L,  d_ra)       bf16
    q_rl = q_rl_ref[0]     # (TQ, n_rel*rpd)  bf16, rel scale pre-folded
    k_rl = k_rl_ref[0]     # (L,  n_rel*rpd)  bf16

    # ---------------- self-attention branch ----------------
    for h in range(n_sa):
        sl = slice(h * hd, (h + 1) * hd)
        p = _softmax_f32(_nt_matmul(q_sa[:, sl], k_sa[:, sl]))      # (TQ, L) f32
        sa_sc_ref[0, h] = p.astype(sa_sc_ref.dtype)
        sa_slab[:, sl] = jnp.dot(p.astype(bf16), v_sa[:, sl],
                                 preferred_element_type=f32)        # (TQ, hd)
    sa_out = jnp.dot(sa_slab[...].astype(bf16), wo_sa_ref[...],
                     preferred_element_type=f32)                    # (TQ, d_sa)

    # ---------------- relations r(x_i, x_j) ----------------
    # one (TQ, L) slab per relation, kept in the relation output block (VMEM) and
    # re-read per head instead of held live in registers.
    for r in range(n_rel):
        sl = slice(r * rpd, (r + 1) * rpd)
        rel_ref[0, r] = _nt_matmul(q_rl[:, sl], k_rl[:, sl]).astype(rel_ref.dtype)

    # ---------------- relational-attention branch ----------------
    for h in range(n_ra):
        sl = slice(h * hd, (h + 1) * hd)
        p = _softmax_f32(_nt_matmul(q_at[:, sl], k_at[:, sl]))      # (TQ, L) f32
        ra_sc_ref[0, h] = p.astype(ra_sc_ref.dtype)
        head = jnp.dot(p.astype(bf16), sv[:, sl],
                       preferred_element_type=f32)                  # (TQ, hd)
        # proj_rel = einsum('ij,ijr->ir') @ W_r[h]; contraction dim n_rel is tiny ->
        # VPU multiply-accumulate (don't waste the MXU on it).
        wr_h = wr_ref[h]                                            # (n_rel, hd) f32
        for r in range(n_rel):
            ar = jnp.sum(p * rel_ref[0, r].astype(f32),
                         axis=-1, keepdims=True)                    # (TQ, 1)
            head = head + ar * wr_h[r:r + 1, :]                     # (TQ, hd)
        ra_slab[:, sl] = head
    ra_out = jnp.dot(ra_slab[...].astype(bf16), wo_ra_ref[...],
                     preferred_element_type=f32)                    # (TQ, d_ra)

    # output = concat(self_attn, rel_attn) along features.
    # NOTE: for lane-dense stores pick configs with d_sa a multiple of 128.
    out_ref[0, :, 0:d_sa] = sa_out
    out_ref[0, :, d_sa:d_sa + d_ra] = ra_out


def _vmem_capacity_bytes():
    try:
        return int(pltpu.get_tpu_info().vmem_capacity_bytes)
    except Exception:
        return 64 << 20  # conservative default (v7x per-TensorCore VMEM)


def _estimate_vmem(TQ, L, d_sa, d_ra, d_rel, n_sa, n_ra, n_rel, hd, d_out):
    """Rough VMEM residency estimate (bytes) for a given query-tile size."""
    b16, f32 = 2, 4
    est = 0
    est += 2 * TQ * (d_sa + d_ra + d_rel) * b16              # q tiles (double-buffered)
    est += 2 * L * (2 * d_sa + 2 * d_ra + d_rel) * b16       # k_sa, v_sa, k_attn, sym_v, k_rel
    est += 2 * (n_ra * n_rel * hd * f32
                + (d_sa * d_sa + d_ra * d_ra) * b16)          # weights (double-buffered)
    est += 2 * (TQ * d_out * f32
                + (n_sa + n_ra + n_rel) * TQ * L * b16)       # output blocks
    est += TQ * (d_sa + d_ra) * f32                           # scratch slabs
    est += 4 * TQ * L * f32                                   # live score / softmax temps
    return est


def dual_attention_forward(x, symbols, params, n_heads_sa, n_heads_ra,
                           scores_dtype=jnp.bfloat16):
    B, L, D = x.shape
    total = n_heads_sa + n_heads_ra
    head_dim = D // total
    n_rel = n_heads_ra
    rel_proj_dim = head_dim
    d_sa = n_heads_sa * head_dim
    d_ra = n_heads_ra * head_dim
    d_rel = n_rel * rel_proj_dim
    d_out = d_sa + d_ra
    assert n_heads_sa > 0 and n_heads_ra > 0
    f32, bf16 = jnp.float32, jnp.bfloat16

    attn_scale = 1.0 / math.sqrt(head_dim)
    rel_scale = 1.0 / math.sqrt(rel_proj_dim)

    # ---- projections hoisted out of the kernel: computed once per token (not per q-tile)
    #      as full-width bf16 matmuls with f32 accumulation; scales folded into Wq.
    xb = x.astype(bf16)
    sb = symbols.astype(bf16)

    def proj(a, w):
        return jnp.einsum("bld,de->ble", a, w.astype(bf16),
                          preferred_element_type=f32).astype(bf16)

    q_sa = proj(xb, params["wq_sa"] * attn_scale)
    k_sa = proj(xb, params["wk_sa"])
    v_sa = proj(xb, params["wv_sa"])
    q_at = proj(xb, params["wq_attn"] * attn_scale)
    k_at = proj(xb, params["wk_attn"])
    q_rl = proj(xb, params["wq_rel"] * rel_scale)
    k_rl = proj(xb, params["wk_rel"])
    sym_v = proj(sb, params["wv_sym"])
    wo_sa = params["wo_sa"].astype(bf16)
    wo_ra = params["wo_ra"].astype(bf16)
    wr = params["wr"].astype(f32)          # used on the VPU in f32

    # ---- query-tile size & per-generation VMEM budget ----
    cap = _vmem_capacity_bytes()
    budget = int(cap * 0.8)                # ~51 MiB on v7x, ~102 MiB on v5e/v6e
    est = partial(_estimate_vmem, L=L, d_sa=d_sa, d_ra=d_ra, d_rel=d_rel,
                  n_sa=n_heads_sa, n_ra=n_heads_ra, n_rel=n_rel,
                  hd=head_dim, d_out=d_out)
    if L <= 256:
        TQ = L
    else:
        cands = (512, 256, 128, 64, 32, 16)
        TQ = next((c for c in cands if L % c == 0 and int(1.3 * est(c)) <= budget), None)
        if TQ is None:
            TQ = next((c for c in cands if L % c == 0), L)
    assert L % TQ == 0, "sequence length must be a multiple of the query tile"
    n_q = L // TQ
    vmem_limit = int(min(max(1.5 * est(TQ), 32 << 20), budget))

    kernel = partial(dual_attention_kernel,
                     n_heads_sa, n_heads_ra, head_dim, n_rel, rel_proj_dim,
                     d_sa, d_ra)

    qmap = lambda b, q: (b, q, 0)          # per-query-tile blocks
    fmap = lambda b, q: (b, 0, 0)          # full-sequence blocks (re-fetched only at new b)
    c2 = lambda b, q: (0, 0)               # constant weight blocks
    c3 = lambda b, q: (0, 0, 0)

    in_specs = [
        pl.BlockSpec((1, TQ, d_sa), qmap),                      # q_sa tile
        pl.BlockSpec((1, L, d_sa), fmap),                       # k_sa full
        pl.BlockSpec((1, L, d_sa), fmap),                       # v_sa full
        pl.BlockSpec((1, TQ, d_ra), qmap),                      # q_attn tile
        pl.BlockSpec((1, L, d_ra), fmap),                       # k_attn full
        pl.BlockSpec((1, L, d_ra), fmap),                       # symbols @ Wv full
        pl.BlockSpec((1, TQ, d_rel), qmap),                     # q_rel tile
        pl.BlockSpec((1, L, d_rel), fmap),                      # k_rel full
        pl.BlockSpec((n_heads_ra, n_rel, head_dim), c3),        # wr
        pl.BlockSpec((d_sa, d_sa), c2),                         # wo_sa
        pl.BlockSpec((d_ra, d_ra), c2),                         # wo_ra
    ]
    out_specs = [
        pl.BlockSpec((1, TQ, d_out), qmap),
        pl.BlockSpec((1, n_heads_sa, TQ, L), lambda b, q: (b, 0, q, 0)),
        pl.BlockSpec((1, n_heads_ra, TQ, L), lambda b, q: (b, 0, q, 0)),
        pl.BlockSpec((1, n_rel, TQ, L), lambda b, q: (b, 0, q, 0)),
    ]
    out_shapes = (
        jax.ShapeDtypeStruct((B, L, d_out), f32),
        jax.ShapeDtypeStruct((B, n_heads_sa, L, L), scores_dtype),
        jax.ShapeDtypeStruct((B, n_heads_ra, L, L), scores_dtype),
        jax.ShapeDtypeStruct((B, n_rel, L, L), scores_dtype),
    )
    scratch_shapes = [
        pltpu.VMEM((TQ, d_sa), f32),   # self-attention head slab
        pltpu.VMEM((TQ, d_ra), f32),   # relational-attention head slab
    ]

    out, sa_scores, ra_scores, rel_rll = pl.pallas_call(
        kernel,
        out_shape=out_shapes,
        grid=(B, n_q),
        in_specs=in_specs,
        out_specs=out_specs,
        scratch_shapes=scratch_shapes,
        compiler_params=pltpu.CompilerParams(
            dimension_semantics=("parallel", "parallel"),
            vmem_limit_bytes=vmem_limit),
    )(q_sa, k_sa, v_sa, q_at, k_at, sym_v, q_rl, k_rl, wr, wo_sa, wo_ra)

    # match torch layout for relations: (B, L, L, n_relations)
    relations = jnp.transpose(rel_rll, (0, 2, 3, 1))
    return out, sa_scores, (ra_scores, relations)


def reference_forward(x, symbols, p, n_heads_sa, n_heads_ra):
    """Pure-JAX f32 reference mirroring the PyTorch module math."""
    B, L, D = x.shape
    total = n_heads_sa + n_heads_ra
    hd = D // total
    n_rel = n_heads_ra
    rel_proj_dim = hd
    attn_scale = 1.0 / math.sqrt(hd)
    rel_scale = 1.0 / math.sqrt(rel_proj_dim)

    def split_heads(t, nh):
        return t.reshape(B, L, nh, hd).transpose(0, 2, 1, 3)   # (B, nh, L, hd)

    # self-attention
    q = split_heads(x @ p["wq_sa"], n_heads_sa)
    k = split_heads(x @ p["wk_sa"], n_heads_sa)
    v = split_heads(x @ p["wv_sa"], n_heads_sa)
    sa_sc = jax.nn.softmax(jnp.einsum("bhid,bhjd->bhij", q, k) * attn_scale, axis=-1)
    sa_out = jnp.einsum("bhij,bhjd->bhid", sa_sc, v)
    sa_out = sa_out.transpose(0, 2, 1, 3).reshape(B, L, n_heads_sa * hd) @ p["wo_sa"]

    # relational attention
    qa = split_heads(x @ p["wq_attn"], n_heads_ra)
    ka = split_heads(x @ p["wk_attn"], n_heads_ra)
    ra_sc = jax.nn.softmax(jnp.einsum("bhid,bhjd->bhij", qa, ka) * attn_scale, axis=-1)
    qr = (x @ p["wq_rel"]).reshape(B, L, n_rel, hd).transpose(0, 2, 1, 3)
    kr = (x @ p["wk_rel"]).reshape(B, L, n_rel, hd).transpose(0, 2, 1, 3)
    rel = jnp.einsum("brid,brjd->brij", qr, kr) * rel_scale          # (B, n_rel, L, L)
    rel_t = rel.transpose(0, 2, 3, 1)                                 # (B, L, L, n_rel)
    sv = split_heads(symbols @ p["wv_sym"], n_heads_ra)
    attended_sym = jnp.einsum("bhij,bhjd->bhid", ra_sc, sv)
    attended_rel = jnp.einsum("bhij,bijr->bhir", ra_sc, rel_t)
    proj_rel = jnp.einsum("bhir,hrd->bhid", attended_rel, p["wr"])
    ra_out = (attended_sym + proj_rel).transpose(0, 2, 1, 3).reshape(B, L, n_heads_ra * hd)
    ra_out = ra_out @ p["wo_ra"]

    out = jnp.concatenate([sa_out, ra_out], axis=-1)
    return out, sa_sc, (ra_sc, rel_t)


def init_params(key, d_model, n_heads_sa, n_heads_ra):
    total = n_heads_sa + n_heads_ra
    hd = d_model // total
    n_rel = n_heads_ra
    d_sa, d_ra = n_heads_sa * hd, n_heads_ra * hd
    shapes = {
        "wq_sa": (d_model, d_sa), "wk_sa": (d_model, d_sa), "wv_sa": (d_model, d_sa),
        "wo_sa": (d_sa, d_sa),
        "wq_attn": (d_model, d_ra), "wk_attn": (d_model, d_ra),
        "wq_rel": (d_model, n_rel * hd), "wk_rel": (d_model, n_rel * hd),
        "wv_sym": (d_model, d_ra),
        "wr": (n_heads_ra, n_rel, hd),
        "wo_ra": (d_ra, d_ra),
    }
    params = {}
    for i, (name, shp) in enumerate(sorted(shapes.items())):
        params[name] = 0.02 * jax.random.normal(jax.random.fold_in(key, i), shp, jnp.float32)
    return params


if __name__ == "__main__":
    B, L, D = 2, 8, 32
    n_heads_sa, n_heads_ra = 2, 2

    key = jax.random.PRNGKey(0)
    kx, ks, kp = jax.random.split(key, 3)
    x = jax.random.normal(kx, (B, L, D), jnp.float32)
    symbols = jax.random.normal(ks, (B, L, D), jnp.float32)
    params = init_params(kp, D, n_heads_sa, n_heads_ra)

    out, sa_scores, (ra_scores, relations) = dual_attention_forward(
        x, symbols, params, n_heads_sa, n_heads_ra)
    jax.block_until_ready(out)

    ref_out, ref_sa, (ref_ra, ref_rel) = reference_forward(
        x, symbols, params, n_heads_sa, n_heads_ra)

    assert out.shape == (B, L, D)
    assert sa_scores.shape == (B, n_heads_sa, L, L)
    assert ra_scores.shape == (B, n_heads_ra, L, L)
    assert relations.shape == (B, L, L, n_heads_ra)
    for got, want in ((out, ref_out), (sa_scores, ref_sa),
                      (ra_scores, ref_ra), (relations, ref_rel)):
        got = got.astype(jnp.float32)
        assert jnp.allclose(got, want, atol=2e-2, rtol=2e-2), \
            f"max diff {jnp.max(jnp.abs(got - want))}"

    print("KERNEL_OK")
</pallas_src>

<mosaic_0001>
module attributes {stable_mosaic.version = 11 : i64} {
  func.func @dual_attention_kernel(%arg0: i32, %arg1: i32, %arg2: memref<1x8x16xbf16, #tpu.memory_space<vmem>>, %arg3: memref<1x8x16xbf16, #tpu.memory_space<vmem>>, %arg4: memref<1x8x16xbf16, #tpu.memory_space<vmem>>, %arg5: memref<1x8x16xbf16, #tpu.memory_space<vmem>>, %arg6: memref<1x8x16xbf16, #tpu.memory_space<vmem>>, %arg7: memref<1x8x16xbf16, #tpu.memory_space<vmem>>, %arg8: memref<1x8x16xbf16, #tpu.memory_space<vmem>>, %arg9: memref<1x8x16xbf16, #tpu.memory_space<vmem>>, %arg10: memref<2x2x8xf32, #tpu.memory_space<vmem>>, %arg11: memref<16x16xbf16, #tpu.memory_space<vmem>>, %arg12: memref<16x16xbf16, #tpu.memory_space<vmem>>, %arg13: memref<1x8x32xf32, #tpu.memory_space<vmem>>, %arg14: memref<1x2x8x8xbf16, #tpu.memory_space<vmem>>, %arg15: memref<1x2x8x8xbf16, #tpu.memory_space<vmem>>, %arg16: memref<1x2x8x8xbf16, #tpu.memory_space<vmem>>, %arg17: memref<8x16xf32, #tpu.memory_space<vmem>>, %arg18: memref<8x16xf32, #tpu.memory_space<vmem>>) attributes {dimension_semantics = [#tpu.dimension_semantics<parallel>, #tpu.dimension_semantics<parallel>], iteration_bounds = array<i64: 2, 1>, scalar_prefetch = 0 : i64, scratch_operands = 2 : i64, tpu.core_type = #tpu.core_type<tc>, window_params = [{transform_indices = @transform_0, window_bounds = array<i64: 1, 8, 16>}, {transform_indices = @transform_1, window_bounds = array<i64: 1, 8, 16>}, {transform_indices = @transform_2, window_bounds = array<i64: 1, 8, 16>}, {transform_indices = @transform_3, window_bounds = array<i64: 1, 8, 16>}, {transform_indices = @transform_4, window_bounds = array<i64: 1, 8, 16>}, {transform_indices = @transform_5, window_bounds = array<i64: 1, 8, 16>}, {transform_indices = @transform_6, window_bounds = array<i64: 1, 8, 16>}, {transform_indices = @transform_7, window_bounds = array<i64: 1, 8, 16>}, {pipeline_mode = #tpu.pipeline_mode<synchronous>, transform_indices = @transform_8, window_bounds = array<i64: 2, 2, 8>}, {pipeline_mode = #tpu.pipeline_mode<synchronous>, transform_indices = @transform_9, window_bounds = array<i64: 16, 16>}, {pipeline_mode = #tpu.pipeline_mode<synchronous>, transform_indices = @transform_10, window_bounds = array<i64: 16, 16>}, {transform_indices = @transform_11, window_bounds = array<i64: 1, 8, 32>}, {transform_indices = @transform_12, window_bounds = array<i64: 1, 2, 8, 8>}, {transform_indices = @transform_13, window_bounds = array<i64: 1, 2, 8, 8>}, {transform_indices = @transform_14, window_bounds = array<i64: 1, 2, 8, 8>}]} {
    %c0 = arith.constant 0 : index
    %c0_0 = arith.constant 0 : index
    %c0_1 = arith.constant 0 : index
    %0 = vector.load %arg2[%c0, %c0_0, %c0_1] : memref<1x8x16xbf16, #tpu.memory_space<vmem>>, vector<1x8x16xbf16>
    %1 = vector.shape_cast %0 : vector<1x8x16xbf16> to vector<8x16xbf16>
    %c0_2 = arith.constant 0 : index
    %c0_3 = arith.constant 0 : index
    %c0_4 = arith.constant 0 : index
    %2 = vector.load %arg3[%c0_2, %c0_3, %c0_4] : memref<1x8x16xbf16, #tpu.memory_space<vmem>>, vector<1x8x16xbf16>
    %3 = vector.shape_cast %2 : vector<1x8x16xbf16> to vector<8x16xbf16>
    %c0_5 = arith.constant 0 : index
    %c0_6 = arith.constant 0 : index
    %c0_7 = arith.constant 0 : index
    %4 = vector.load %arg4[%c0_5, %c0_6, %c0_7] : memref<1x8x16xbf16, #tpu.memory_space<vmem>>, vector<1x8x16xbf16>
    %5 = vector.shape_cast %4 : vector<1x8x16xbf16> to vector<8x16xbf16>
    %c0_8 = arith.constant 0 : index
    %c0_9 = arith.constant 0 : index
    %c0_10 = arith.constant 0 : index
    %6 = vector.load %arg5[%c0_8, %c0_9, %c0_10] : memref<1x8x16xbf16, #tpu.memory_space<vmem>>, vector<1x8x16xbf16>
    %7 = vector.shape_cast %6 : vector<1x8x16xbf16> to vector<8x16xbf16>
    %c0_11 = arith.constant 0 : index
    %c0_12 = arith.constant 0 : index
    %c0_13 = arith.constant 0 : index
    %8 = vector.load %arg6[%c0_11, %c0_12, %c0_13] : memref<1x8x16xbf16, #tpu.memory_space<vmem>>, vector<1x8x16xbf16>
    %9 = vector.shape_cast %8 : vector<1x8x16xbf16> to vector<8x16xbf16>
    %c0_14 = arith.constant 0 : index
    %c0_15 = arith.constant 0 : index
    %c0_16 = arith.constant 0 : index
    %10 = vector.load %arg7[%c0_14, %c0_15, %c0_16] : memref<1x8x16xbf16, #tpu.memory_space<vmem>>, vector<1x8x16xbf16>
    %11 = vector.shape_cast %10 : vector<1x8x16xbf16> to vector<8x16xbf16>
    %c0_17 = arith.constant 0 : index
    %c0_18 = arith.constant 0 : index
    %c0_19 = arith.constant 0 : index
    %12 = vector.load %arg8[%c0_17, %c0_18, %c0_19] : memref<1x8x16xbf16, #tpu.memory_space<vmem>>, vector<1x8x16xbf16>
    %13 = vector.shape_cast %12 : vector<1x8x16xbf16> to vector<8x16xbf16>
    %c0_20 = arith.constant 0 : index
    %c0_21 = arith.constant 0 : index
    %c0_22 = arith.constant 0 : index
    %14 = vector.load %arg9[%c0_20, %c0_21, %c0_22] : memref<1x8x16xbf16, #tpu.memory_space<vmem>>, vector<1x8x16xbf16>
    %15 = vector.shape_cast %14 : vector<1x8x16xbf16> to vector<8x16xbf16>
    %16 = vector.extract_strided_slice %1 {offsets = [0, 0], sizes = [8, 8], strides = [1, 1]} : vector<8x16xbf16> to vector<8x8xbf16>
    %17 = vector.extract_strided_slice %3 {offsets = [0, 0], sizes = [8, 8], strides = [1, 1]} : vector<8x16xbf16> to vector<8x8xbf16>
    %cst = arith.constant dense<0.000000e+00> : vector<8x8xf32>
    %18 = tpu.matmul %16, %17, %cst {dimension_numbers = #tpu.dot_dimension_numbers<[1], [1], [0], [0], [0, 0, 1, 0], [], []>} : vector<8x8xbf16>, vector<8x8xbf16>, vector<8x8xf32> -> vector<8x8xf32>
    %cst_23 = arith.constant dense<0xFF800000> : vector<8xf32>
    %19 = vector.multi_reduction <maximumf>, %18, %cst_23 [1] : vector<8x8xf32> to vector<8xf32>
    %20 = vector.shape_cast %19 : vector<8xf32> to vector<8x1xf32>
    %21 = vector.broadcast %20 : vector<8x1xf32> to vector<8x8xf32>
    %22 = arith.subf %18, %21 : vector<8x8xf32>
    %23 = math.exp %22 : vector<8x8xf32>
    %cst_24 = arith.constant dense<0.000000e+00> : vector<8xf32>
    %24 = vector.multi_reduction <add>, %23, %cst_24 [1] : vector<8x8xf32> to vector<8xf32>
    %25 = vector.shape_cast %24 : vector<8xf32> to vector<8x1xf32>
    %26 = tpu.reciprocal %25 {approx = true} : vector<8x1xf32> -> vector<8x1xf32>
    %27 = vector.broadcast %26 : vector<8x1xf32> to vector<8x8xf32>
    %28 = arith.mulf %23, %27 : vector<8x8xf32>
    %29 = arith.truncf %28 : vector<8x8xf32> to vector<8x8xbf16>
    %c0_25 = arith.constant 0 : index
    %c0_26 = arith.constant 0 : index
    %c0_27 = arith.constant 0 : index
    %c0_28 = arith.constant 0 : index
    %30 = vector.load %arg14[%c0_25, %c0_26, %c0_27, %c0_28] : memref<1x2x8x8xbf16, #tpu.memory_space<vmem>>, vector<1x1x8x8xbf16>
    %31 = vector.shape_cast %30 : vector<1x1x8x8xbf16> to vector<8x8xbf16>
    %32 = vector.shape_cast %29 : vector<8x8xbf16> to vector<1x1x8x8xbf16>
    tpu.vector_store %arg14[%c0_25, %c0_26, %c0_27, %c0_28], %32 {strides = array<i32>} : memref<1x2x8x8xbf16, #tpu.memory_space<vmem>>, vector<1x1x8x8xbf16>,
    %33 = arith.truncf %28 : vector<8x8xf32> to vector<8x8xbf16>
    %34 = vector.extract_strided_slice %5 {offsets = [0, 0], sizes = [8, 8], strides = [1, 1]} : vector<8x16xbf16> to vector<8x8xbf16>
    %cst_29 = arith.constant dense<0.000000e+00> : vector<8x8xf32>
    %35 = tpu.matmul %33, %34, %cst_29 {dimension_numbers = #tpu.dot_dimension_numbers<[1], [0], [0], [1], [0, 0, 1, 1], [], []>} : vector<8x8xbf16>, vector<8x8xbf16>, vector<8x8xf32> -> vector<8x8xf32>
    %c0_30 = arith.constant 0 : index
    %c0_31 = arith.constant 0 : index
    %36 = vector.load %arg17[%c0_30, %c0_31] : memref<8x16xf32, #tpu.memory_space<vmem>>, vector<8x8xf32>
    tpu.vector_store %arg17[%c0_30, %c0_31], %35 {strides = array<i32>} : memref<8x16xf32, #tpu.memory_space<vmem>>, vector<8x8xf32>,
    %37 = vector.extract_strided_slice %1 {offsets = [0, 8], sizes = [8, 8], strides = [1, 1]} : vector<8x16xbf16> to vector<8x8xbf16>
    %38 = vector.extract_strided_slice %3 {offsets = [0, 8], sizes = [8, 8], strides = [1, 1]} : vector<8x16xbf16> to vector<8x8xbf16>
    %cst_32 = arith.constant dense<0.000000e+00> : vector<8x8xf32>
    %39 = tpu.matmul %37, %38, %cst_32 {dimension_numbers = #tpu.dot_dimension_numbers<[1], [1], [0], [0], [0, 0, 1, 0], [], []>} : vector<8x8xbf16>, vector<8x8xbf16>, vector<8x8xf32> -> vector<8x8xf32>
    %cst_33 = arith.constant dense<0xFF800000> : vector<8xf32>
    %40 = vector.multi_reduction <maximumf>, %39, %cst_33 [1] : vector<8x8xf32> to vector<8xf32>
    %41 = vector.shape_cast %40 : vector<8xf32> to vector<8x1xf32>
    %42 = vector.broadcast %41 : vector<8x1xf32> to vector<8x8xf32>
    %43 = arith.subf %39, %42 : vector<8x8xf32>
    %44 = math.exp %43 : vector<8x8xf32>
    %cst_34 = arith.constant dense<0.000000e+00> : vector<8xf32>
    %45 = vector.multi_reduction <add>, %44, %cst_34 [1] : vector<8x8xf32> to vector<8xf32>
    %46 = vector.shape_cast %45 : vector<8xf32> to vector<8x1xf32>
    %47 = tpu.reciprocal %46 {approx = true} : vector<8x1xf32> -> vector<8x1xf32>
    %48 = vector.broadcast %47 : vector<8x1xf32> to vector<8x8xf32>
    %49 = arith.mulf %44, %48 : vector<8x8xf32>
    %50 = arith.truncf %49 : vector<8x8xf32> to vector<8x8xbf16>
    %c0_35 = arith.constant 0 : index
    %c1 = arith.constant 1 : index
    %c0_36 = arith.constant 0 : index
    %c0_37 = arith.constant 0 : index
    %51 = vector.load %arg14[%c0_35, %c1, %c0_36, %c0_37] : memref<1x2x8x8xbf16, #tpu.memory_space<vmem>>, vector<1x1x8x8xbf16>
    %52 = vector.shape_cast %51 : vector<1x1x8x8xbf16> to vector<8x8xbf16>
    %53 = vector.shape_cast %50 : vector<8x8xbf16> to vector<1x1x8x8xbf16>
    tpu.vector_store %arg14[%c0_35, %c1, %c0_36, %c0_37], %53 {strides = array<i32>} : memref<1x2x8x8xbf16, #tpu.memory_space<vmem>>, vector<1x1x8x8xbf16>,
    %54 = arith.truncf %49 : vector<8x8xf32> to vector<8x8xbf16>
    %55 = vector.extract_strided_slice %5 {offsets = [0, 8], sizes = [8, 8], strides = [1, 1]} : vector<8x16xbf16> to vector<8x8xbf16>
    %cst_38 = arith.constant dense<0.000000e+00> : vector<8x8xf32>
    %56 = tpu.matmul %54, %55, %cst_38 {dimension_numbers = #tpu.dot_dimension_numbers<[1], [0], [0], [1], [0, 0, 1, 1], [], []>} : vector<8x8xbf16>, vector<8x8xbf16>, vector<8x8xf32> -> vector<8x8xf32>
    %c0_39 = arith.constant 0 : index
    %c8 = arith.constant 8 : index
    %57 = vector.load %arg17[%c0_39, %c8] : memref<8x16xf32, #tpu.memory_space<vmem>>, vector<8x8xf32>
    tpu.vector_store %arg17[%c0_39, %c8], %56 {strides = array<i32>} : memref<8x16xf32, #tpu.memory_space<vmem>>, vector<8x8xf32>,
    %c0_40 = arith.constant 0 : index
    %c0_41 = arith.constant 0 : index
    %58 = vector.load %arg17[%c0_40, %c0_41] : memref<8x16xf32, #tpu.memory_space<vmem>>, vector<8x16xf32>
    %59 = arith.truncf %58 : vector<8x16xf32> to vector<8x16xbf16>
    %c0_42 = arith.constant 0 : index
    %c0_43 = arith.constant 0 : index
    %60 = vector.load %arg11[%c0_42, %c0_43] : memref<16x16xbf16, #tpu.memory_space<vmem>>, vector<16x16xbf16>
    %cst_44 = arith.constant dense<0.000000e+00> : vector<8x16xf32>
    %61 = tpu.matmul %59, %60, %cst_44 {dimension_numbers = #tpu.dot_dimension_numbers<[1], [0], [0], [1], [0, 0, 1, 1], [], []>} : vector<8x16xbf16>, vector<16x16xbf16>, vector<8x16xf32> -> vector<8x16xf32>
    %62 = vector.extract_strided_slice %13 {offsets = [0, 0], sizes = [8, 8], strides = [1, 1]} : vector<8x16xbf16> to vector<8x8xbf16>
    %63 = vector.extract_strided_slice %15 {offsets = [0, 0], sizes = [8, 8], strides = [1, 1]} : vector<8x16xbf16> to vector<8x8xbf16>
    %cst_45 = arith.constant dense<0.000000e+00> : vector<8x8xf32>
    %64 = tpu.matmul %62, %63, %cst_45 {dimension_numbers = #tpu.dot_dimension_numbers<[1], [1], [0], [0], [0, 0, 1, 0], [], []>} : vector<8x8xbf16>, vector<8x8xbf16>, vector<8x8xf32> -> vector<8x8xf32>
    %65 = arith.truncf %64 : vector<8x8xf32> to vector<8x8xbf16>
    %c0_46 = arith.constant 0 : index
    %c0_47 = arith.constant 0 : index
    %c0_48 = arith.constant 0 : index
    %c0_49 = arith.constant 0 : index
    %66 = vector.load %arg16[%c0_46, %c0_47, %c0_48, %c0_49] : memref<1x2x8x8xbf16, #tpu.memory_space<vmem>>, vector<1x1x8x8xbf16>
    %67 = vector.shape_cast %66 : vector<1x1x8x8xbf16> to vector<8x8xbf16>
    %68 = vector.shape_cast %65 : vector<8x8xbf16> to vector<1x1x8x8xbf16>
    tpu.vector_store %arg16[%c0_46, %c0_47, %c0_48, %c0_49], %68 {strides = array<i32>} : memref<1x2x8x8xbf16, #tpu.memory_space<vmem>>, vector<1x1x8x8xbf16>,
    %69 = vector.extract_strided_slice %13 {offsets = [0, 8], sizes = [8, 8], strides = [1, 1]} : vector<8x16xbf16> to vector<8x8xbf16>
    %70 = vector.extract_strided_slice %15 {offsets = [0, 8], sizes = [8, 8], strides = [1, 1]} : vector<8x16xbf16> to vector<8x8xbf16>
    %cst_50 = arith.constant dense<0.000000e+00> : vector<8x8xf32>
    %71 = tpu.matmul %69, %70, %cst_50 {dimension_numbers = #tpu.dot_dimension_numbers<[1], [1], [0], [0], [0, 0, 1, 0], [], []>} : vector<8x8xbf16>, vector<8x8xbf16>, vector<8x8xf32> -> vector<8x8xf32>
    %72 = arith.truncf %71 : vector<8x8xf32> to vector<8x8xbf16>
    %c0_51 = arith.constant 0 : index
    %c1_52 = arith.constant 1 : index
    %c0_53 = arith.constant 0 : index
    %c0_54 = arith.constant 0 : index
    %73 = vector.load %arg16[%c0_51, %c1_52, %c0_53, %c0_54] : memref<1x2x8x8xbf16, #tpu.memory_space<vmem>>, vector<1x1x8x8xbf16>
    %74 = vector.shape_cast %73 : vector<1x1x8x8xbf16> to vector<8x8xbf16>
    %75 = vector.shape_cast %72 : vector<8x8xbf16> to vector<1x1x8x8xbf16>
    tpu.vector_store %arg16[%c0_51, %c1_52, %c0_53, %c0_54], %75 {strides = array<i32>} : memref<1x2x8x8xbf16, #tpu.memory_space<vmem>>, vector<1x1x8x8xbf16>,
    %76 = vector.extract_strided_slice %7 {offsets = [0, 0], sizes = [8, 8], strides = [1, 1]} : vector<8x16xbf16> to vector<8x8xbf16>
    %77 = vector.extract_strided_slice %9 {offsets = [0, 0], sizes = [8, 8], strides = [1, 1]} : vector<8x16xbf16> to vector<8x8xbf16>
    %cst_55 = arith.constant dense<0.000000e+00> : vector<8x8xf32>
    %78 = tpu.matmul %76, %77, %cst_55 {dimension_numbers = #tpu.dot_dimension_numbers<[1], [1], [0], [0], [0, 0, 1, 0], [], []>} : vector<8x8xbf16>, vector<8x8xbf16>, vector<8x8xf32> -> vector<8x8xf32>
    %cst_56 = arith.constant dense<0xFF800000> : vector<8xf32>
    %79 = vector.multi_reduction <maximumf>, %78, %cst_56 [1] : vector<8x8xf32> to vector<8xf32>
    %80 = vector.shape_cast %79 : vector<8xf32> to vector<8x1xf32>
    %81 = vector.broadcast %80 : vector<8x1xf32> to vector<8x8xf32>
    %82 = arith.subf %78, %81 : vector<8x8xf32>
    %83 = math.exp %82 : vector<8x8xf32>
    %cst_57 = arith.constant dense<0.000000e+00> : vector<8xf32>
    %84 = vector.multi_reduction <add>, %83, %cst_57 [1] : vector<8x8xf32> to vector<8xf32>
    %85 = vector.shape_cast %84 : vector<8xf32> to vector<8x1xf32>
    %86 = tpu.reciprocal %85 {approx = true} : vector<8x1xf32> -> vector<8x1xf32>
    %87 = vector.broadcast %86 : vector<8x1xf32> to vector<8x8xf32>
    %88 = arith.mulf %83, %87 : vector<8x8xf32>
    %89 = arith.truncf %88 : vector<8x8xf32> to vector<8x8xbf16>
    %c0_58 = arith.constant 0 : index
    %c0_59 = arith.constant 0 : index
    %c0_60 = arith.constant 0 : index
    %c0_61 = arith.constant 0 : index
    %90 = vector.load %arg15[%c0_58, %c0_59, %c0_60, %c0_61] : memref<1x2x8x8xbf16, #tpu.memory_space<vmem>>, vector<1x1x8x8xbf16>
    %91 = vector.shape_cast %90 : vector<1x1x8x8xbf16> to vector<8x8xbf16>
    %92 = vector.shape_cast %89 : vector<8x8xbf16> to vector<1x1x8x8xbf16>
    tpu.vector_store %arg15[%c0_58, %c0_59, %c0_60, %c0_61], %92 {strides = array<i32>} : memref<1x2x8x8xbf16, #tpu.memory_space<vmem>>, vector<1x1x8x8xbf16>,
    %93 = arith.truncf %88 : vector<8x8xf32> to vector<8x8xbf16>
    %94 = vector.extract_strided_slice %11 {offsets = [0, 0], sizes = [8, 8], strides = [1, 1]} : vector<8x16xbf16> to vector<8x8xbf16>
    %cst_62 = arith.constant dense<0.000000e+00> : vector<8x8xf32>
    %95 = tpu.matmul %93, %94, %cst_62 {dimension_numbers = #tpu.dot_dimension_numbers<[1], [0], [0], [1], [0, 0, 1, 1], [], []>} : vector<8x8xbf16>, vector<8x8xbf16>, vector<8x8xf32> -> vector<8x8xf32>
    %c0_63 = arith.constant 0 : index
    %c0_64 = arith.constant 0 : index
    %c0_65 = arith.constant 0 : index
    %96 = vector.load %arg10[%c0_63, %c0_64, %c0_65] : memref<2x2x8xf32, #tpu.memory_space<vmem>>, vector<1x2x8xf32>
    %97 = vector.shape_cast %96 : vector<1x2x8xf32> to vector<2x8xf32>
    %c0_66 = arith.constant 0 : index
    %c0_67 = arith.constant 0 : index
    %c0_68 = arith.constant 0 : index
    %c0_69 = arith.constant 0 : index
    %98 = vector.load %arg16[%c0_66, %c0_67, %c0_68, %c0_69] : memref<1x2x8x8xbf16, #tpu.memory_space<vmem>>, vector<1x1x8x8xbf16>
    %99 = vector.shape_cast %98 : vector<1x1x8x8xbf16> to vector<8x8xbf16>
    %100 = arith.extf %99 : vector<8x8xbf16> to vector<8x8xf32>
    %101 = arith.mulf %88, %100 : vector<8x8xf32>
    %cst_70 = arith.constant dense<0.000000e+00> : vector<8xf32>
    %102 = vector.multi_reduction <add>, %101, %cst_70 [1] : vector<8x8xf32> to vector<8xf32>
    %103 = vector.shape_cast %102 : vector<8xf32> to vector<8x1xf32>
    %104 = vector.extract_strided_slice %97 {offsets = [0, 0], sizes = [1, 8], strides = [1, 1]} : vector<2x8xf32> to vector<1x8xf32>
    %105 = vector.broadcast %103 : vector<8x1xf32> to vector<8x8xf32>
    %106 = vector.broadcast %104 : vector<1x8xf32> to vector<8x8xf32>
    %107 = arith.mulf %105, %106 : vector<8x8xf32>
    %108 = arith.addf %95, %107 : vector<8x8xf32>
    %c0_71 = arith.constant 0 : index
    %c1_72 = arith.constant 1 : index
    %c0_73 = arith.constant 0 : index
    %c0_74 = arith.constant 0 : index
    %109 = vector.load %arg16[%c0_71, %c1_72, %c0_73, %c0_74] : memref<1x2x8x8xbf16, #tpu.memory_space<vmem>>, vector<1x1x8x8xbf16>
    %110 = vector.shape_cast %109 : vector<1x1x8x8xbf16> to vector<8x8xbf16>
    %111 = arith.extf %110 : vector<8x8xbf16> to vector<8x8xf32>
    %112 = arith.mulf %88, %111 : vector<8x8xf32>
    %cst_75 = arith.constant dense<0.000000e+00> : vector<8xf32>
    %113 = vector.multi_reduction <add>, %112, %cst_75 [1] : vector<8x8xf32> to vector<8xf32>
    %114 = vector.shape_cast %113 : vector<8xf32> to vector<8x1xf32>
    %115 = vector.extract_strided_slice %97 {offsets = [1, 0], sizes = [1, 8], strides = [1, 1]} : vector<2x8xf32> to vector<1x8xf32>
    %116 = vector.broadcast %114 : vector<8x1xf32> to vector<8x8xf32>
    %117 = vector.broadcast %115 : vector<1x8xf32> to vector<8x8xf32>
    %118 = arith.mulf %116, %117 : vector<8x8xf32>
    %119 = arith.addf %108, %118 : vector<8x8xf32>
    %c0_76 = arith.constant 0 : index
    %c0_77 = arith.constant 0 : index
    %120 = vector.load %arg18[%c0_76, %c0_77] : memref<8x16xf32, #tpu.memory_space<vmem>>, vector<8x8xf32>
    tpu.vector_store %arg18[%c0_76, %c0_77], %119 {strides = array<i32>} : memref<8x16xf32, #tpu.memory_space<vmem>>, vector<8x8xf32>,
    %121 = vector.extract_strided_slice %7 {offsets = [0, 8], sizes = [8, 8], strides = [1, 1]} : vector<8x16xbf16> to vector<8x8xbf16>
    %122 = vector.extract_strided_slice %9 {offsets = [0, 8], sizes = [8, 8], strides = [1, 1]} : vector<8x16xbf16> to vector<8x8xbf16>
    %cst_78 = arith.constant dense<0.000000e+00> : vector<8x8xf32>
    %123 = tpu.matmul %121, %122, %cst_78 {dimension_numbers = #tpu.dot_dimension_numbers<[1], [1], [0], [0], [0, 0, 1, 0], [], []>} : vector<8x8xbf16>, vector<8x8xbf16>, vector<8x8xf32> -> vector<8x8xf32>
    %cst_79 = arith.constant dense<0xFF800000> : vector<8xf32>
    %124 = vector.multi_reduction <maximumf>, %123, %cst_79 [1] : vector<8x8xf32> to vector<8xf32>
    %125 = vector.shape_cast %124 : vector<8xf32> to vector<8x1xf32>
    %126 = vector.broadcast %125 : vector<8x1xf32> to vector<8x8xf32>
    %127 = arith.subf %123, %126 : vector<8x8xf32>
    %128 = math.exp %127 : vector<8x8xf32>
    %cst_80 = arith.constant dense<0.000000e+00> : vector<8xf32>
    %129 = vector.multi_reduction <add>, %128, %cst_80 [1] : vector<8x8xf32> to vector<8xf32>
    %130 = vector.shape_cast %129 : vector<8xf32> to vector<8x1xf32>
    %131 = tpu.reciprocal %130 {approx = true} : vector<8x1xf32> -> vector<8x1xf32>
    %132 = vector.broadcast %131 : vector<8x1xf32> to vector<8x8xf32>
    %133 = arith.mulf %128, %132 : vector<8x8xf32>
    %134 = arith.truncf %133 : vector<8x8xf32> to vector<8x8xbf16>
    %c0_81 = arith.constant 0 : index
    %c1_82 = arith.constant 1 : index
    %c0_83 = arith.constant 0 : index
    %c0_84 = arith.constant 0 : index
    %135 = vector.load %arg15[%c0_81, %c1_82, %c0_83, %c0_84] : memref<1x2x8x8xbf16, #tpu.memory_space<vmem>>, vector<1x1x8x8xbf16>
    %136 = vector.shape_cast %135 : vector<1x1x8x8xbf16> to vector<8x8xbf16>
    %137 = vector.shape_cast %134 : vector<8x8xbf16> to vector<1x1x8x8xbf16>
    tpu.vector_store %arg15[%c0_81, %c1_82, %c0_83, %c0_84], %137 {strides = array<i32>} : memref<1x2x8x8xbf16, #tpu.memory_space<vmem>>, vector<1x1x8x8xbf16>,
    %138 = arith.truncf %133 : vector<8x8xf32> to vector<8x8xbf16>
    %139 = vector.extract_strided_slice %11 {offsets = [0, 8], sizes = [8, 8], strides = [1, 1]} : vector<8x16xbf16> to vector<8x8xbf16>
    %cst_85 = arith.constant dense<0.000000e+00> : vector<8x8xf32>
    %140 = tpu.matmul %138, %139, %cst_85 {dimension_numbers = #tpu.dot_dimension_numbers<[1], [0], [0], [1], [0, 0, 1, 1], [], []>} : vector<8x8xbf16>, vector<8x8xbf16>, vector<8x8xf32> -> vector<8x8xf32>
    %c1_86 = arith.constant 1 : index
    %c0_87 = arith.constant 0 : index
    %c0_88 = arith.constant 0 : index
    %141 = vector.load %arg10[%c1_86, %c0_87, %c0_88] : memref<2x2x8xf32, #tpu.memory_space<vmem>>, vector<1x2x8xf32>
    %142 = vector.shape_cast %141 : vector<1x2x8xf32> to vector<2x8xf32>
    %c0_89 = arith.constant 0 : index
    %c0_90 = arith.constant 0 : index
    %c0_91 = arith.constant 0 : index
    %c0_92 = arith.constant 0 : index
    %143 = vector.load %arg16[%c0_89, %c0_90, %c0_91, %c0_92] : memref<1x2x8x8xbf16, #tpu.memory_space<vmem>>, vector<1x1x8x8xbf16>
    %144 = vector.shape_cast %143 : vector<1x1x8x8xbf16> to vector<8x8xbf16>
    %145 = arith.extf %144 : vector<8x8xbf16> to vector<8x8xf32>
    %146 = arith.mulf %133, %145 : vector<8x8xf32>
    %cst_93 = arith.constant dense<0.000000e+00> : vector<8xf32>
    %147 = vector.multi_reduction <add>, %146, %cst_93 [1] : vector<8x8xf32> to vector<8xf32>
    %148 = vector.shape_cast %147 : vector<8xf32> to vector<8x1xf32>
    %149 = vector.extract_strided_slice %142 {offsets = [0, 0], sizes = [1, 8], strides = [1, 1]} : vector<2x8xf32> to vector<1x8xf32>
    %150 = vector.broadcast %148 : vector<8x1xf32> to vector<8x8xf32>
    %151 = vector.broadcast %149 : vector<1x8xf32> to vector<8x8xf32>
    %152 = arith.mulf %150, %151 : vector<8x8xf32>
    %153 = arith.addf %140, %152 : vector<8x8xf32>
    %c0_94 = arith.constant 0 : index
    %c1_95 = arith.constant 1 : index
    %c0_96 = arith.constant 0 : index
    %c0_97 = arith.constant 0 : index
    %154 = vector.load %arg16[%c0_94, %c1_95, %c0_96, %c0_97] : memref<1x2x8x8xbf16, #tpu.memory_space<vmem>>, vector<1x1x8x8xbf16>
    %155 = vector.shape_cast %154 : vector<1x1x8x8xbf16> to vector<8x8xbf16>
    %156 = arith.extf %155 : vector<8x8xbf16> to vector<8x8xf32>
    %157 = arith.mulf %133, %156 : vector<8x8xf32>
    %cst_98 = arith.constant dense<0.000000e+00> : vector<8xf32>
    %158 = vector.multi_reduction <add>, %157, %cst_98 [1] : vector<8x8xf32> to vector<8xf32>
    %159 = vector.shape_cast %158 : vector<8xf32> to vector<8x1xf32>
    %160 = vector.extract_strided_slice %142 {offsets = [1, 0], sizes = [1, 8], strides = [1, 1]} : vector<2x8xf32> to vector<1x8xf32>
    %161 = vector.broadcast %159 : vector<8x1xf32> to vector<8x8xf32>
    %162 = vector.broadcast %160 : vector<1x8xf32> to vector<8x8xf32>
    %163 = arith.mulf %161, %162 : vector<8x8xf32>
    %164 = arith.addf %153, %163 : vector<8x8xf32>
    %c0_99 = arith.constant 0 : index
    %c8_100 = arith.constant 8 : index
    %165 = vector.load %arg18[%c0_99, %c8_100] : memref<8x16xf32, #tpu.memory_space<vmem>>, vector<8x8xf32>
    tpu.vector_store %arg18[%c0_99, %c8_100], %164 {strides = array<i32>} : memref<8x16xf32, #tpu.memory_space<vmem>>, vector<8x8xf32>,
    %c0_101 = arith.constant 0 : index
    %c0_102 = arith.constant 0 : index
    %166 = vector.load %arg18[%c0_101, %c0_102] : memref<8x16xf32, #tpu.memory_space<vmem>>, vector<8x16xf32>
    %167 = arith.truncf %166 : vector<8x16xf32> to vector<8x16xbf16>
    %c0_103 = arith.constant 0 : index
    %c0_104 = arith.constant 0 : index
    %168 = vector.load %arg12[%c0_103, %c0_104] : memref<16x16xbf16, #tpu.memory_space<vmem>>, vector<16x16xbf16>
    %cst_105 = arith.constant dense<0.000000e+00> : vector<8x16xf32>
    %169 = tpu.matmul %167, %168, %cst_105 {dimension_numbers = #tpu.dot_dimension_numbers<[1], [0], [0], [1], [0, 0, 1, 1], [], []>} : vector<8x16xbf16>, vector<16x16xbf16>, vector<8x16xf32> -> vector<8x16xf32>
    %c0_106 = arith.constant 0 : index
    %c0_107 = arith.constant 0 : index
    %c0_108 = arith.constant 0 : index
    %170 = vector.load %arg13[%c0_106, %c0_107, %c0_108] : memref<1x8x32xf32, #tpu.memory_space<vmem>>, vector<1x8x16xf32>
    %171 = vector.shape_cast %170 : vector<1x8x16xf32> to vector<8x16xf32>
    %172 = vector.shape_cast %61 : vector<8x16xf32> to vector<1x8x16xf32>
    tpu.vector_store %arg13[%c0_106, %c0_107, %c0_108], %172 {strides = array<i32>} : memref<1x8x32xf32, #tpu.memory_space<vmem>>, vector<1x8x16xf32>,
    %c0_109 = arith.constant 0 : index
    %c0_110 = arith.constant 0 : index
    %c16 = arith.constant 16 : index
    %173 = vector.load %arg13[%c0_109, %c0_110, %c16] : memref<1x8x32xf32, #tpu.memory_space<vmem>>, vector<1x8x16xf32>
    %174 = vector.shape_cast %173 : vector<1x8x16xf32> to vector<8x16xf32>
    %175 = vector.shape_cast %169 : vector<8x16xf32> to vector<1x8x16xf32>
    tpu.vector_store %arg13[%c0_109, %c0_110, %c16], %175 {strides = array<i32>} : memref<1x8x32xf32, #tpu.memory_space<vmem>>, vector<1x8x16xf32>,
    return
  }
  func.func @transform_0(%arg0: i32, %arg1: i32) -> (i32, i32, i32) {
    %c0_i32 = arith.constant 0 : i32
    %c0_i32_0 = arith.constant 0 : i32
    return %arg0, %arg1, %c0_i32 : i32, i32, i32
  }
  func.func @transform_1(%arg0: i32, %arg1: i32) -> (i32, i32, i32) {
    %c0_i32 = arith.constant 0 : i32
    %c0_i32_0 = arith.constant 0 : i32
    %c0_i32_1 = arith.constant 0 : i32
    return %arg0, %c0_i32, %c0_i32_0 : i32, i32, i32
  }
  func.func @transform_2(%arg0: i32, %arg1: i32) -> (i32, i32, i32) {
    %c0_i32 = arith.constant 0 : i32
    %c0_i32_0 = arith.constant 0 : i32
    %c0_i32_1 = arith.constant 0 : i32
    return %arg0, %c0_i32, %c0_i32_0 : i32, i32, i32
  }
  func.func @transform_3(%arg0: i32, %arg1: i32) -> (i32, i32, i32) {
    %c0_i32 = arith.constant 0 : i32
    %c0_i32_0 = arith.constant 0 : i32
    return %arg0, %arg1, %c0_i32 : i32, i32, i32
  }
  func.func @transform_4(%arg0: i32, %arg1: i32) -> (i32, i32, i32) {
    %c0_i32 = arith.constant 0 : i32
    %c0_i32_0 = arith.constant 0 : i32
    %c0_i32_1 = arith.constant 0 : i32
    return %arg0, %c0_i32, %c0_i32_0 : i32, i32, i32
  }
  func.func @transform_5(%arg0: i32, %arg1: i32) -> (i32, i32, i32) {
    %c0_i32 = arith.constant 0 : i32
    %c0_i32_0 = arith.constant 0 : i32
    %c0_i32_1 = arith.constant 0 : i32
    return %arg0, %c0_i32, %c0_i32_0 : i32, i32, i32
  }
  func.func @transform_6(%arg0: i32, %arg1: i32) -> (i32, i32, i32) {
    %c0_i32 = arith.constant 0 : i32
    %c0_i32_0 = arith.constant 0 : i32
    return %arg0, %arg1, %c0_i32 : i32, i32, i32
  }
  func.func @transform_7(%arg0: i32, %arg1: i32) -> (i32, i32, i32) {
    %c0_i32 = arith.constant 0 : i32
    %c0_i32_0 = arith.constant 0 : i32
    %c0_i32_1 = arith.constant 0 : i32
    return %arg0, %c0_i32, %c0_i32_0 : i32, i32, i32
  }
  func.func @transform_8(%arg0: i32, %arg1: i32) -> (i32, i32, i32) {
    %c0_i32 = arith.constant 0 : i32
    %c0_i32_0 = arith.constant 0 : i32
    %c0_i32_1 = arith.constant 0 : i32
    %c0_i32_2 = arith.constant 0 : i32
    return %c0_i32, %c0_i32_0, %c0_i32_1 : i32, i32, i32
  }
  func.func @transform_9(%arg0: i32, %arg1: i32) -> (i32, i32) {
    %c0_i32 = arith.constant 0 : i32
    %c0_i32_0 = arith.constant 0 : i32
    %c0_i32_1 = arith.constant 0 : i32
    return %c0_i32, %c0_i32_0 : i32, i32
  }
  func.func @transform_10(%arg0: i32, %arg1: i32) -> (i32, i32) {
    %c0_i32 = arith.constant 0 : i32
    %c0_i32_0 = arith.constant 0 : i32
    %c0_i32_1 = arith.constant 0 : i32
    return %c0_i32, %c0_i32_0 : i32, i32
  }
  func.func @transform_11(%arg0: i32, %arg1: i32) -> (i32, i32, i32) {
    %c0_i32 = arith.constant 0 : i32
    %c0_i32_0 = arith.constant 0 : i32
    return %arg0, %arg1, %c0_i32 : i32, i32, i32
  }
  func.func @transform_12(%arg0: i32, %arg1: i32) -> (i32, i32, i32, i32) {
    %c0_i32 = arith.constant 0 : i32
    %c0_i32_0 = arith.constant 0 : i32
    %c0_i32_1 = arith.constant 0 : i32
    return %arg0, %c0_i32, %arg1, %c0_i32_0 : i32, i32, i32, i32
  }
  func.func @transform_13(%arg0: i32, %arg1: i32) -> (i32, i32, i32, i32) {
    %c0_i32 = arith.constant 0 : i32
    %c0_i32_0 = arith.constant 0 : i32
    %c0_i32_1 = arith.constant 0 : i32
    return %arg0, %c0_i32, %arg1, %c0_i32_0 : i32, i32, i32, i32
  }
  func.func @transform_14(%arg0: i32, %arg1: i32) -> (i32, i32, i32, i32) {
    %c0_i32 = arith.constant 0 : i32
    %c0_i32_0 = arith.constant 0 : i32
    %c0_i32_1 = arith.constant 0 : i32
    return %arg0, %c0_i32, %arg1, %c0_i32_0 : i32, i32, i32, i32
  }
}

</mosaic_0001>

<llo_original>
// kernel: tpu_custom_call.1
$region0: #{tpu_custom_call.1}
  #allocation0 [shape = 'u32[]', space=smem, size = 0x4, offset = 0x4, fixed_abs, tag = 'smem constant byte address 0x4 - core index']
  #allocation1 [shape = 'u32[144,128]{1,0:T(1,128)}', space=vmem, size = 0x12000, scoped, tag = 'internal scratch']
  #allocation2 [shape = 'f32[8,16]{1,0:T(8,128)}', space=vmem, size = 0x1000, scoped, tag = 'scratch operand']
  #allocation3 [shape = 'f32[8,16]{1,0:T(8,128)}', space=vmem, size = 0x1000, scoped, tag = 'scratch operand']
  %s0 = inlined_call_operand.hbm [shape: bf16[2,8,16], index: 0, kind: input, shape index: {}]
  %s1 = inlined_call_operand.hbm [shape: bf16[2,8,16], index: 1, kind: input, shape index: {}]
  %s2 = inlined_call_operand.hbm [shape: bf16[2,8,16], index: 2, kind: input, shape index: {}]
  %s3 = inlined_call_operand.vmem [shape: bf16[2,8,16], index: 3, kind: input, shape index: {}]
  %s4 = inlined_call_operand.hbm [shape: bf16[2,8,16], index: 4, kind: input, shape index: {}]
  %s5 = inlined_call_operand.vmem [shape: bf16[2,8,16], index: 5, kind: input, shape index: {}]
  %s6 = inlined_call_operand.hbm [shape: bf16[2,8,16], index: 6, kind: input, shape index: {}]
  %s7 = inlined_call_operand.vmem [shape: bf16[2,8,16], index: 7, kind: input, shape index: {}]
  %s8 = inlined_call_operand.hbm [shape: f32[2,2,8], index: 8, kind: input, shape index: {}]
  %s9 = inlined_call_operand.vmem [shape: bf16[16,16], index: 9, kind: input, shape index: {}]
  %s10 = inlined_call_operand.hbm [shape: bf16[16,16], index: 10, kind: input, shape index: {}]
  %s11 = inlined_call_operand.hbm [shape: f32[2,8,32], index: 11, kind: output, shape index: {0}]
  %s12 = inlined_call_operand.hbm [shape: bf16[2,2,8,8], index: 12, kind: output, shape index: {1}]
  %s13 = inlined_call_operand.hbm [shape: bf16[2,2,8,8], index: 13, kind: output, shape index: {2}]
  %s14 = inlined_call_operand.hbm [shape: bf16[2,2,8,8], index: 14, kind: output, shape index: {3}]
  %15 = xla_tuple %s11, %s12, %s13, %s14
  %s16 = sld [smem:[#allocation0]]
  $region129: #{tpu_custom_call.1} parent=0
    _
  %s18 = ssub.s32 1, %s16
  %s19 = scalar_select 0, %s18, %s16
  $region1: #{tpu_custom_call.1} parent=0
    #allocation4 [shape = 'u8[4096]{0}', space=vmem, size = 0x1000, scoped, tag = 'input window, operand 0']
    #allocation5 [shape = 's32[2]{0}', space=sflag, size = 0x8, scoped, tag = 'scoped memory for tpu_custom_call.1']
    #allocation6 [shape = 's32[2]{0}', space=sflag, size = 0x8, scoped, tag = 'scoped memory for tpu_custom_call.1']
    #allocation7 [shape = 'u8[4096]{0}', space=vmem, size = 0x1000, scoped, tag = 'input window, operand 1']
    #allocation8 [shape = 's32[2]{0}', space=sflag, size = 0x8, scoped, tag = 'scoped memory for tpu_custom_call.1']
    #allocation9 [shape = 'u8[4096]{0}', space=vmem, size = 0x1000, scoped, tag = 'input window, operand 2']
    #allocation10 [shape = 'u8[4096]{0}', space=vmem, size = 0x1000, scoped, tag = 'input window, operand 4']
    #allocation11 [shape = 's32[2]{0}', space=sflag, size = 0x8, scoped, tag = 'scoped memory for tpu_custom_call.1']
    #allocation12 [shape = 'u8[4096]{0}', space=vmem, size = 0x1000, scoped, tag = 'input window, operand 6']
    #allocation13 [shape = 'u8[2048]{0}', space=vmem, size = 0x800, scoped, tag = 'input window, operand 8, single buffered']
    #allocation14 [shape = 's32[1]{0}', space=sflag, size = 0x4, scoped, tag = 'scoped memory for tpu_custom_call.1']
    #allocation15 [shape = 'u8[4096]{0}', space=vmem, size = 0x1000, scoped, tag = 'input window, operand 10, single buffered']
    #allocation16 [shape = 'u8[8192]{0}', space=vmem, size = 0x2000, scoped, tag = 'output window, operand 0']
    #allocation17 [shape = 'u8[8192]{0}', space=vmem, size = 0x2000, scoped, tag = 'output window, operand 1']
    #allocation18 [shape = 's32[2]{0}', space=sflag, size = 0x8, scoped, tag = 'scoped memory for tpu_custom_call.1']
    #allocation19 [shape = 'u8[8192]{0}', space=vmem, size = 0x2000, scoped, tag = 'output window, operand 2']
    #allocation20 [shape = 'u8[8192]{0}', space=vmem, size = 0x2000, scoped, tag = 'output window, operand 3']
    #allocation21 [shape = 's32[2]{0}', space=sflag, size = 0x8, scoped, tag = 'scoped memory for tpu_custom_call.1']
    %20 = vsyncpa [#allocation5], 0
    %s21 = scalar_lea.sflag [#allocation5], 1
    %22 = vsyncpa %s21, 0
    %23 = vsyncpa [#allocation8], 0
    %s24 = scalar_lea.sflag [#allocation8], 1
    %25 = vsyncpa %s24, 0
    %26 = vsyncpa [#allocation11], 0
    %s27 = scalar_lea.sflag [#allocation11], 1
    %28 = vsyncpa %s27, 0
    %29 = vsyncpa [#allocation14], 0
    %30 = vsyncpa [#allocation6], 0
    %s31 = scalar_lea.sflag [#allocation6], 1
    %32 = vsyncpa %s31, 0
    %33 = vsyncpa [#allocation18], 0
    %s34 = scalar_lea.sflag [#allocation18], 1
    %35 = vsyncpa %s34, 0
    %36 = vsyncpa [#allocation21], 0
    %s37 = scalar_lea.sflag [#allocation21], 1
    %38 = vsyncpa %s37, 0
    loop: start=0, step=1, limit=4
    $region2: #{tpu_custom_call.1} parent=1 // loop_pre_header
      _
    $region3: #{tpu_custom_call.1} parent=1 // loop_header
      %s40 = sphi 0, %s44
      %p41 = scmp.ge.s32.totalorder %s40, 4
      %s47 = sphi 0, %s59
      %s48 = sphi 0, %s55
      %s49 = sphi 0, %s47
      %s50 = sphi 0, %s48
      %s51 = sphi 0, %s49
      %s52 = sphi 0, %s50
      %s64 = sphi 0, %s66
      %s67 = sphi 0, %s64
      %s68 = sphi 0, %s67
      %s84 = sphi 0, %s68
      %s90 = sphi 0, %s92
      %s93 = sphi 0, %s90
      %s94 = sphi 0, %s93
      %s110 = sphi 0, %s94
      %s116 = sphi 0, %s118
      %s119 = sphi 0, %s116
      %s120 = sphi 0, %s119
      %s136 = sphi 0, %s120
      %s144 = sphi 0, %s146
      %s147 = sphi 0, %s144
      %s148 = sphi 0, %s147
      %s164 = sphi 0, %s148
      %s170 = sphi 0, %s172
      %s173 = sphi 0, %s170
      %s174 = sphi 0, %s173
      %s190 = sphi 0, %s174
      %s196 = sphi 0, %s198
      %s199 = sphi 0, %s196
      %s200 = sphi 0, %s199
      %s216 = sphi 0, %s200
      %s224 = sphi 0, %s226
      %s227 = sphi 0, %s224
      %s228 = sphi 0, %s227
      %s244 = sphi 0, %s228
      %s250 = sphi 0, %s252
      %s253 = sphi 0, %s250
      %s254 = sphi 0, %s253
      %s270 = sphi 0, %s254
      %s274 = sphi 0, %s274
      %s276 = sphi 0, %s274
      %s277 = sphi 0, %s276
      %s291 = sphi 0, %s277
      %s295 = sphi 0, %s295
      %s297 = sphi 0, %s295
      %s298 = sphi 0, %s297
      %s312 = sphi 0, %s298
      %s316 = sphi 0, %s316
      %s318 = sphi 0, %s316
      %s319 = sphi 0, %s318
      %s333 = sphi 0, %s319
      %s341 = sphi 0, %s343
      %s344 = sphi 0, %s341
      %s345 = sphi 0, %s344
      %s361 = sphi 0, %s345
      %s369 = sphi 0, %s371
      %s372 = sphi 0, %s369
      %s373 = sphi 0, %s372
      %s389 = sphi 0, %s373
      %s397 = sphi 0, %s399
      %s400 = sphi 0, %s397
      %s401 = sphi 0, %s400
      %s417 = sphi 0, %s401
      %s425 = sphi 0, %s427
      %s428 = sphi 0, %s425
      %s429 = sphi 0, %s428
      %s445 = sphi 0, %s429
    $region4: #{tpu_custom_call.1} parent=1 // loop_header_branch
      %43 = sbr.rel (%p41) target = $region8
    $region5: #{tpu_custom_call.1} parent=1 // loop_body
      %s45 = ssub.s32 %s40, 1
      %s46 = ssub.s32 %s40, 2
      %s53 = sadd.s32 1, %s48
      %p54 = scmp.ge.s32.totalorder %s53, 1
      %s55 = scalar_select %p54, 0, %s53
      %s56 = sadd.s32 1, %s47
      %s57 = scalar_select %p54, %s56, %s47
      %p58 = scmp.ge.s32.totalorder %s57, 2
      %s59 = scalar_select %p58, 0, %s57
      %s60 = ssub.s32 %s47, %s59
      %s61 = ssub.s32 %s48, %s55
      %s62 = sor.u32 %s60, %s61
      %p63 = scmp.eq.s32.totalorder %s62, 0
      %s65 = sadd.s32 %s64, 1
      %s66 = scalar_select %p63, %s64, %s65
      %p69 = pneg %p63
      %p70 = scmp.eq.s32.totalorder %s40, 1
      %p71 = por %p69, %p70
      %p72 = scmp.ne.s32.totalorder %s64, %s67
      %p73 = scmp.eq.s32.totalorder %s40, 0
      %p74 = por %p72, %p73
      %p75 = scmp.ne.s32.totalorder %s64, %s67
      %p76 = scmp.eq.s32.totalorder %s45, 1
      %p77 = por %p75, %p76
      %p78 = scmp.ne.s32.totalorder %s67, %s68
      %p79 = scmp.eq.s32.totalorder %s45, 0
      %p80 = por %p78, %p79
      %p81 = scmp.ne.s32.totalorder %s67, %s68
      %p82 = scmp.eq.s32.totalorder %s46, 1
      %p83 = por %p81, %p82
      %p85 = scmp.ne.s32.totalorder %s68, %s84
      %p86 = scmp.eq.s32.totalorder %s46, 0
      %p87 = por %p85, %p86
      %s88 = ssub.s32 %s47, %s59
      %p89 = scmp.eq.s32.totalorder %s88, 0
      %s91 = sadd.s32 %s90, 1
      %s92 = scalar_select %p89, %s90, %s91
      %p95 = pneg %p89
      %p96 = scmp.eq.s32.totalorder %s40, 1
      %p97 = por %p95, %p96
      %p98 = scmp.ne.s32.totalorder %s90, %s93
      %p99 = scmp.eq.s32.totalorder %s40, 0
      %p100 = por %p98, %p99
      %p101 = scmp.ne.s32.totalorder %s90, %s93
      %p102 = scmp.eq.s32.totalorder %s45, 1
      %p103 = por %p101, %p102
      %p104 = scmp.ne.s32.totalorder %s93, %s94
      %p105 = scmp.eq.s32.totalorder %s45, 0
      %p106 = por %p104, %p105
      %p107 = scmp.ne.s32.totalorder %s93, %s94
      %p108 = scmp.eq.s32.totalorder %s46, 1
      %p109 = por %p107, %p108
      %p111 = scmp.ne.s32.totalorder %s94, %s110
      %p112 = scmp.eq.s32.totalorder %s46, 0
      %p113 = por %p111, %p112
      %s114 = ssub.s32 %s47, %s59
      %p115 = scmp.eq.s32.totalorder %s114, 0
      %s117 = sadd.s32 %s116, 1
      %s118 = scalar_select %p115, %s116, %s117
      %p121 = pneg %p115
      %p122 = scmp.eq.s32.totalorder %s40, 1
      %p123 = por %p121, %p122
      %p124 = scmp.ne.s32.totalorder %s116, %s119
      %p125 = scmp.eq.s32.totalorder %s40, 0
      %p126 = por %p124, %p125
      %p127 = scmp.ne.s32.totalorder %s116, %s119
      %p128 = scmp.eq.s32.totalorder %s45, 1
      %p129 = por %p127, %p128
      %p130 = scmp.ne.s32.totalorder %s119, %s120
      %p131 = scmp.eq.s32.totalorder %s45, 0
      %p132 = por %p130, %p131
      %p133 = scmp.ne.s32.totalorder %s119, %s120
      %p134 = scmp.eq.s32.totalorder %s46, 1
      %p135 = por %p133, %p134
      %p137 = scmp.ne.s32.totalorder %s120, %s136
      %p138 = scmp.eq.s32.totalorder %s46, 0
      %p139 = por %p137, %p138
      %s140 = ssub.s32 %s47, %s59
      %s141 = ssub.s32 %s48, %s55
      %s142 = sor.u32 %s140, %s141
      %p143 = scmp.eq.s32.totalorder %s142, 0
      %s145 = sadd.s32 %s144, 1
      %s146 = scalar_select %p143, %s144, %s145
      %p149 = pneg %p143
      %p150 = scmp.eq.s32.totalorder %s40, 1
      %p151 = por %p149, %p150
      %p152 = scmp.ne.s32.totalorder %s144, %s147
      %p153 = scmp.eq.s32.totalorder %s40, 0
      %p154 = por %p152, %p153
      %p155 = scmp.ne.s32.totalorder %s144, %s147
      %p156 = scmp.eq.s32.totalorder %s45, 1
      %p157 = por %p155, %p156
      %p158 = scmp.ne.s32.totalorder %s147, %s148
      %p159 = scmp.eq.s32.totalorder %s45, 0
      %p160 = por %p158, %p159
      %p161 = scmp.ne.s32.totalorder %s147, %s148
      %p162 = scmp.eq.s32.totalorder %s46, 1
      %p163 = por %p161, %p162
      %p165 = scmp.ne.s32.totalorder %s148, %s164
      %p166 = scmp.eq.s32.totalorder %s46, 0
      %p167 = por %p165, %p166
      %s168 = ssub.s32 %s47, %s59
      %p169 = scmp.eq.s32.totalorder %s168, 0
      %s171 = sadd.s32 %s170, 1
      %s172 = scalar_select %p169, %s170, %s171
      %p175 = pneg %p169
      %p176 = scmp.eq.s32.totalorder %s40, 1
      %p177 = por %p175, %p176
      %p178 = scmp.ne.s32.totalorder %s170, %s173
      %p179 = scmp.eq.s32.totalorder %s40, 0
      %p180 = por %p178, %p179
      %p181 = scmp.ne.s32.totalorder %s170, %s173
      %p182 = scmp.eq.s32.totalorder %s45, 1
      %p183 = por %p181, %p182
      %p184 = scmp.ne.s32.totalorder %s173, %s174
      %p185 = scmp.eq.s32.totalorder %s45, 0
      %p186 = por %p184, %p185
      %p187 = scmp.ne.s32.totalorder %s173, %s174
      %p188 = scmp.eq.s32.totalorder %s46, 1
      %p189 = por %p187, %p188
      %p191 = scmp.ne.s32.totalorder %s174, %s190
      %p192 = scmp.eq.s32.totalorder %s46, 0
      %p193 = por %p191, %p192
      %s194 = ssub.s32 %s47, %s59
      %p195 = scmp.eq.s32.totalorder %s194, 0
      %s197 = sadd.s32 %s196, 1
      %s198 = scalar_select %p195, %s196, %s197
      %p201 = pneg %p195
      %p202 = scmp.eq.s32.totalorder %s40, 1
      %p203 = por %p201, %p202
      %p204 = scmp.ne.s32.totalorder %s196, %s199
      %p205 = scmp.eq.s32.totalorder %s40, 0
      %p206 = por %p204, %p205
      %p207 = scmp.ne.s32.totalorder %s196, %s199
      %p208 = scmp.eq.s32.totalorder %s45, 1
      %p209 = por %p207, %p208
      %p210 = scmp.ne.s32.totalorder %s199, %s200
      %p211 = scmp.eq.s32.totalorder %s45, 0
      %p212 = por %p210, %p211
      %p213 = scmp.ne.s32.totalorder %s199, %s200
      %p214 = scmp.eq.s32.totalorder %s46, 1
      %p215 = por %p213, %p214
      %p217 = scmp.ne.s32.totalorder %s200, %s216
      %p218 = scmp.eq.s32.totalorder %s46, 0
      %p219 = por %p217, %p218
      %s220 = ssub.s32 %s47, %s59
      %s221 = ssub.s32 %s48, %s55
      %s222 = sor.u32 %s220, %s221
      %p223 = scmp.eq.s32.totalorder %s222, 0
      %s225 = sadd.s32 %s224, 1
      %s226 = scalar_select %p223, %s224, %s225
      %p229 = pneg %p223
      %p230 = scmp.eq.s32.totalorder %s40, 1
      %p231 = por %p229, %p230
      %p232 = scmp.ne.s32.totalorder %s224, %s227
      %p233 = scmp.eq.s32.totalorder %s40, 0
      %p234 = por %p232, %p233
      %p235 = scmp.ne.s32.totalorder %s224, %s227
      %p236 = scmp.eq.s32.totalorder %s45, 1
      %p237 = por %p235, %p236
      %p238 = scmp.ne.s32.totalorder %s227, %s228
      %p239 = scmp.eq.s32.totalorder %s45, 0
      %p240 = por %p238, %p239
      %p241 = scmp.ne.s32.totalorder %s227, %s228
      %p242 = scmp.eq.s32.totalorder %s46, 1
      %p243 = por %p241, %p242
      %p245 = scmp.ne.s32.totalorder %s228, %s244
      %p246 = scmp.eq.s32.totalorder %s46, 0
      %p247 = por %p245, %p246
      %s248 = ssub.s32 %s47, %s59
      %p249 = scmp.eq.s32.totalorder %s248, 0
      %s251 = sadd.s32 %s250, 1
      %s252 = scalar_select %p249, %s250, %s251
      %p255 = pneg %p249
      %p256 = scmp.eq.s32.totalorder %s40, 1
      %p257 = por %p255, %p256
      %p258 = scmp.ne.s32.totalorder %s250, %s253
      %p259 = scmp.eq.s32.totalorder %s40, 0
      %p260 = por %p258, %p259
      %p261 = scmp.ne.s32.totalorder %s250, %s253
      %p262 = scmp.eq.s32.totalorder %s45, 1
      %p263 = por %p261, %p262
      %p264 = scmp.ne.s32.totalorder %s253, %s254
      %p265 = scmp.eq.s32.totalorder %s45, 0
      %p266 = por %p264, %p265
      %p267 = scmp.ne.s32.totalorder %s253, %s254
      %p268 = scmp.eq.s32.totalorder %s46, 1
      %p269 = por %p267, %p268
      %p271 = scmp.ne.s32.totalorder %s254, %s270
      %p272 = scmp.eq.s32.totalorder %s46, 0
      %p273 = por %p271, %p272
      %s275 = sadd.s32 %s274, 1
      %p278 = scmp.eq.s32.totalorder %s40, 1
      %p279 = scmp.ne.s32.totalorder %s274, %s276
      %p280 = scmp.eq.s32.totalorder %s40, 0
      %p281 = por %p279, %p280
      %p282 = scmp.ne.s32.totalorder %s274, %s276
      %p283 = scmp.eq.s32.totalorder %s45, 1
      %p284 = por %p282, %p283
      %p285 = scmp.ne.s32.totalorder %s276, %s277
      %p286 = scmp.eq.s32.totalorder %s45, 0
      %p287 = por %p285, %p286
      %p288 = scmp.ne.s32.totalorder %s276, %s277
      %p289 = scmp.eq.s32.totalorder %s46, 1
      %p290 = por %p288, %p289
      %p292 = scmp.ne.s32.totalorder %s277, %s291
      %p293 = scmp.eq.s32.totalorder %s46, 0
      %p294 = por %p292, %p293
      %s296 = sadd.s32 %s295, 1
      %p299 = scmp.eq.s32.totalorder %s40, 1
      %p300 = scmp.ne.s32.totalorder %s295, %s297
      %p301 = scmp.eq.s32.totalorder %s40, 0
      %p302 = por %p300, %p301
      %p303 = scmp.ne.s32.totalorder %s295, %s297
      %p304 = scmp.eq.s32.totalorder %s45, 1
      %p305 = por %p303, %p304
      %p306 = scmp.ne.s32.totalorder %s297, %s298
      %p307 = scmp.eq.s32.totalorder %s45, 0
      %p308 = por %p306, %p307
      %p309 = scmp.ne.s32.totalorder %s297, %s298
      %p310 = scmp.eq.s32.totalorder %s46, 1
      %p311 = por %p309, %p310
      %p313 = scmp.ne.s32.totalorder %s298, %s312
      %p314 = scmp.eq.s32.totalorder %s46, 0
      %p315 = por %p313, %p314
      %s317 = sadd.s32 %s316, 1
      %p320 = scmp.eq.s32.totalorder %s40, 1
      %p321 = scmp.ne.s32.totalorder %s316, %s318
      %p322 = scmp.eq.s32.totalorder %s40, 0
      %p323 = por %p321, %p322
      %p324 = scmp.ne.s32.totalorder %s316, %s318
      %p325 = scmp.eq.s32.totalorder %s45, 1
      %p326 = por %p324, %p325
      %p327 = scmp.ne.s32.totalorder %s318, %s319
      %p328 = scmp.eq.s32.totalorder %s45, 0
      %p329 = por %p327, %p328
      %p330 = scmp.ne.s32.totalorder %s318, %s319
      %p331 = scmp.eq.s32.totalorder %s46, 1
      %p332 = por %p330, %p331
      %p334 = scmp.ne.s32.totalorder %s319, %s333
      %p335 = scmp.eq.s32.totalorder %s46, 0
      %p336 = por %p334, %p335
      %s337 = ssub.s32 %s47, %s59
      %s338 = ssub.s32 %s48, %s55
      %s339 = sor.u32 %s337, %s338
      %p340 = scmp.eq.s32.totalorder %s339, 0
      %s342 = sadd.s32 %s341, 1
      %s343 = scalar_select %p340, %s341, %s342
      %p346 = pneg %p340
      %p347 = scmp.eq.s32.totalorder %s40, 1
      %p348 = por %p346, %p347
      %p349 = scmp.ne.s32.totalorder %s341, %s344
      %p350 = scmp.eq.s32.totalorder %s40, 0
      %p351 = por %p349, %p350
      %p352 = scmp.ne.s32.totalorder %s341, %s344
      %p353 = scmp.eq.s32.totalorder %s45, 1
      %p354 = por %p352, %p353
      %p355 = scmp.ne.s32.totalorder %s344, %s345
      %p356 = scmp.eq.s32.totalorder %s45, 0
      %p357 = por %p355, %p356
      %p358 = scmp.ne.s32.totalorder %s344, %s345
      %p359 = scmp.eq.s32.totalorder %s46, 1
      %p360 = por %p358, %p359
      %p362 = scmp.ne.s32.totalorder %s345, %s361
      %p363 = scmp.eq.s32.totalorder %s46, 0
      %p364 = por %p362, %p363
      %s365 = ssub.s32 %s47, %s59
      %s366 = ssub.s32 %s48, %s55
      %s367 = sor.u32 %s365, %s366
      %p368 = scmp.eq.s32.totalorder %s367, 0
      %s370 = sadd.s32 %s369, 1
      %s371 = scalar_select %p368, %s369, %s370
      %p374 = pneg %p368
      %p375 = scmp.eq.s32.totalorder %s40, 1
      %p376 = por %p374, %p375
      %p377 = scmp.ne.s32.totalorder %s369, %s372
      %p378 = scmp.eq.s32.totalorder %s40, 0
      %p379 = por %p377, %p378
      %p380 = scmp.ne.s32.totalorder %s369, %s372
      %p381 = scmp.eq.s32.totalorder %s45, 1
      %p382 = por %p380, %p381
      %p383 = scmp.ne.s32.totalorder %s372, %s373
      %p384 = scmp.eq.s32.totalorder %s45, 0
      %p385 = por %p383, %p384
      %p386 = scmp.ne.s32.totalorder %s372, %s373
      %p387 = scmp.eq.s32.totalorder %s46, 1
      %p388 = por %p386, %p387
      %p390 = scmp.ne.s32.totalorder %s373, %s389
      %p391 = scmp.eq.s32.totalorder %s46, 0
      %p392 = por %p390, %p391
      %s393 = ssub.s32 %s47, %s59
      %s394 = ssub.s32 %s48, %s55
      %s395 = sor.u32 %s393, %s394
      %p396 = scmp.eq.s32.totalorder %s395, 0
      %s398 = sadd.s32 %s397, 1
      %s399 = scalar_select %p396, %s397, %s398
      %p402 = pneg %p396
      %p403 = scmp.eq.s32.totalorder %s40, 1
      %p404 = por %p402, %p403
      %p405 = scmp.ne.s32.totalorder %s397, %s400
      %p406 = scmp.eq.s32.totalorder %s40, 0
      %p407 = por %p405, %p406
      %p408 = scmp.ne.s32.totalorder %s397, %s400
      %p409 = scmp.eq.s32.totalorder %s45, 1
      %p410 = por %p408, %p409
      %p411 = scmp.ne.s32.totalorder %s400, %s401
      %p412 = scmp.eq.s32.totalorder %s45, 0
      %p413 = por %p411, %p412
      %p414 = scmp.ne.s32.totalorder %s400, %s401
      %p415 = scmp.eq.s32.totalorder %s46, 1
      %p416 = por %p414, %p415
      %p418 = scmp.ne.s32.totalorder %s401, %s417
      %p419 = scmp.eq.s32.totalorder %s46, 0
      %p420 = por %p418, %p419
      %s421 = ssub.s32 %s47, %s59
      %s422 = ssub.s32 %s48, %s55
      %s423 = sor.u32 %s421, %s422
      %p424 = scmp.eq.s32.totalorder %s423, 0
      %s426 = sadd.s32 %s425, 1
      %s427 = scalar_select %p424, %s425, %s426
      %p430 = pneg %p424
      %p431 = scmp.eq.s32.totalorder %s40, 1
      %p432 = por %p430, %p431
      %p433 = scmp.ne.s32.totalorder %s425, %s428
      %p434 = scmp.eq.s32.totalorder %s40, 0
      %p435 = por %p433, %p434
      %p436 = scmp.ne.s32.totalorder %s425, %s428
      %p437 = scmp.eq.s32.totalorder %s45, 1
      %p438 = por %p436, %p437
      %p439 = scmp.ne.s32.totalorder %s428, %s429
      %p440 = scmp.eq.s32.totalorder %s45, 0
      %p441 = por %p439, %p440
      %p442 = scmp.ne.s32.totalorder %s428, %s429
      %p443 = scmp.eq.s32.totalorder %s46, 1
      %p444 = por %p442, %p443
      %p446 = scmp.ne.s32.totalorder %s429, %s445
      %p447 = scmp.eq.s32.totalorder %s46, 0
      %p448 = por %p446, %p447
      %p449 = scmp.le.s32.totalorder 1, %s40
      %p450 = scmp.lt.s32.totalorder %s40, 3
      %p451 = pnand %p449, %p450
      %p452 = pneg %p451
      // Predicated region
      $region9: #{tpu_custom_call.1} parent=5 // pred_check
        _
      $region10: #{tpu_custom_call.1} parent=5 // pred_check_branch
        %454 = sbr.rel (%p451) target = $region12
      $region11: #{tpu_custom_call.1} parent=5 // pred_region
        %s455 = ssub.s32 %s40, 1
        // Predicated region
        $region13: #{tpu_custom_call.1} parent=11 // pred_check
          %p456 = pneg %p287
        $region14: #{tpu_custom_call.1} parent=11 // pred_check_branch
          %458 = sbr.rel (%p456) target = $region16
        $region15: #{tpu_custom_call.1} parent=11 // pred_region
          %s460 = ssub.s32 64, 64
          %461 = vsyncadd [#allocation14], %s460
          %s462 = sshll.u32 [#allocation13], 4
          %s463 = int_to_ptr.vmem [resolvable:$true] %s462
          %468 = dma.hbm_to_vmem [thread:$0]  %s8, 64, %s463, [#allocation14], 32, 32, 2
        $region16: #{tpu_custom_call.1} parent=11 // pred_fallthru
          _
        // Predicated region
        $region17: #{tpu_custom_call.1} parent=11 // pred_check
          %p469 = pneg %p308
        $region18: #{tpu_custom_call.1} parent=11 // pred_check_branch
          %471 = sbr.rel (%p469) target = $region20
        $region19: #{tpu_custom_call.1} parent=11 // pred_region
          _
        $region20: #{tpu_custom_call.1} parent=11 // pred_fallthru
          _
        // Predicated region
        $region21: #{tpu_custom_call.1} parent=11 // pred_check
          %p472 = pneg %p329
        $region22: #{tpu_custom_call.1} parent=11 // pred_check_branch
          %474 = sbr.rel (%p472) target = $region24
        $region23: #{tpu_custom_call.1} parent=11 // pred_region
          %s476 = ssub.s32 128, 128
          %477 = vsyncadd [#allocation14], %s476
          %s478 = sshll.u32 [#allocation15], 4
          %s479 = int_to_ptr.vmem [resolvable:$true] %s478
          %484 = dma.hbm_to_vmem [thread:$0]  %s10, 128, %s479, [#allocation14], 64, 64, 4
        $region24: #{tpu_custom_call.1} parent=11 // pred_fallthru
          _
      $region12: #{tpu_custom_call.1} parent=5 // pred_fallthru
        _
      %p485 = scmp.lt.s32.totalorder %s40, 2
      // Predicated region
      $region25: #{tpu_custom_call.1} parent=5 // pred_check
        %p486 = pneg %p485
      $region26: #{tpu_custom_call.1} parent=5 // pred_check_branch
        %488 = sbr.rel (%p486) target = $region28
      $region27: #{tpu_custom_call.1} parent=5 // pred_region
        // Predicated region
        $region29: #{tpu_custom_call.1} parent=27 // pred_check
          %p489 = pneg %p74
        $region30: #{tpu_custom_call.1} parent=27 // pred_check_branch
          %491 = sbr.rel (%p489) target = $region32
        $region31: #{tpu_custom_call.1} parent=27 // pred_region
          %s492 = sand.u32 %s64, 1
          %s493 = scalar_lea.sflag [#allocation5], %s492
          %s494 = sand.u32 %s64, 1
          %s495 = smul.addr %s494, 4
          %s496 = scalar_lea.vmem [#allocation4], %s495
          %s498 = ssub.s32 64, 64
          %499 = vsyncadd %s493, %s498
          %s500 = sadd.s32 %s48, %s47
          %s501 = smul.addr %s500, 64
          %s502 = scalar_lea.hbm %s0, %s501
          %s504 = sshll.u32 %s496, 4
          %s505 = int_to_ptr.vmem [resolvable:$true] %s504
          %507 = dma.hbm_to_vmem [thread:$0]  %s502, 64, %s505, %s493
        $region32: #{tpu_custom_call.1} parent=27 // pred_fallthru
          _
        // Predicated region
        $region33: #{tpu_custom_call.1} parent=27 // pred_check
          %p508 = pneg %p100
        $region34: #{tpu_custom_call.1} parent=27 // pred_check_branch
          %510 = sbr.rel (%p508) target = $region36
        $region35: #{tpu_custom_call.1} parent=27 // pred_region
          %s511 = sand.u32 %s40, 1
          %s512 = scalar_lea.sflag [#allocation8], %s511
          %s513 = sand.u32 %s90, 1
          %s514 = smul.addr %s513, 4
          %s515 = scalar_lea.vmem [#allocation7], %s514
          %s517 = ssub.s32 64, 64
          %518 = vsyncadd %s512, %s517
          %s519 = smul.addr %s47, 64
          %s520 = scalar_lea.hbm %s1, %s519
          %s522 = sshll.u32 %s515, 4
          %s523 = int_to_ptr.vmem [resolvable:$true] %s522
          %525 = dma.hbm_to_vmem [thread:$0]  %s520, 64, %s523, %s512
        $region36: #{tpu_custom_call.1} parent=27 // pred_fallthru
          _
        // Predicated region
        $region37: #{tpu_custom_call.1} parent=27 // pred_check
          %p526 = pneg %p126
        $region38: #{tpu_custom_call.1} parent=27 // pred_check_branch
          %528 = sbr.rel (%p526) target = $region40
        $region39: #{tpu_custom_call.1} parent=27 // pred_region
          %s529 = sand.u32 %s40, 1
          %s530 = scalar_lea.sflag [#allocation8], %s529
          %s531 = sand.u32 %s116, 1
          %s532 = smul.addr %s531, 4
          %s533 = scalar_lea.vmem [#allocation9], %s532
          %s535 = ssub.s32 64, 64
          %536 = vsyncadd %s530, %s535
          %s537 = smul.addr %s47, 64
          %s538 = scalar_lea.hbm %s2, %s537
          %s540 = sshll.u32 %s533, 4
          %s541 = int_to_ptr.vmem [resolvable:$true] %s540
          %543 = dma.hbm_to_vmem [thread:$0]  %s538, 64, %s541, %s530
        $region40: #{tpu_custom_call.1} parent=27 // pred_fallthru
          _
        // Predicated region
        $region41: #{tpu_custom_call.1} parent=27 // pred_check
          %p544 = pneg %p154
        $region42: #{tpu_custom_call.1} parent=27 // pred_check_branch
          %546 = sbr.rel (%p544) target = $region44
        $region43: #{tpu_custom_call.1} parent=27 // pred_region
          %p547 = scmp.lt.s32.totalorder %s47, 1
          %s548 = scalar_select %p547, %s47, 1
          %p549 = scmp.lt.s32.totalorder %s48, 0
          %s550 = scalar_select %p549, %s48, 0
          %s551 = sadd.s32 %s550, %s548
          %s552 = smul.addr %s551, 4
          %s553 = scalar_lea.vmem %s3, %s552
        $region44: #{tpu_custom_call.1} parent=27 // pred_fallthru
          _
        // Predicated region
        $region45: #{tpu_custom_call.1} parent=27 // pred_check
          %p554 = pneg %p180
        $region46: #{tpu_custom_call.1} parent=27 // pred_check_branch
          %556 = sbr.rel (%p554) target = $region48
        $region47: #{tpu_custom_call.1} parent=27 // pred_region
          %s557 = sand.u32 %s40, 1
          %s558 = scalar_lea.sflag [#allocation11], %s557
          %s559 = sand.u32 %s170, 1
          %s560 = smul.addr %s559, 4
          %s561 = scalar_lea.vmem [#allocation10], %s560
          %s563 = ssub.s32 64, 64
          %564 = vsyncadd %s558, %s563
          %s565 = smul.addr %s47, 64
          %s566 = scalar_lea.hbm %s4, %s565
          %s568 = sshll.u32 %s561, 4
          %s569 = int_to_ptr.vmem [resolvable:$true] %s568
          %571 = dma.hbm_to_vmem [thread:$0]  %s566, 64, %s569, %s558
        $region48: #{tpu_custom_call.1} parent=27 // pred_fallthru
          _
        // Predicated region
        $region49: #{tpu_custom_call.1} parent=27 // pred_check
          %p572 = pneg %p206
        $region50: #{tpu_custom_call.1} parent=27 // pred_check_branch
          %574 = sbr.rel (%p572) target = $region52
        $region51: #{tpu_custom_call.1} parent=27 // pred_region
          %p575 = scmp.lt.s32.totalorder %s47, 1
          %s576 = scalar_select %p575, %s47, 1
          %s577 = smul.addr %s576, 4
          %s578 = scalar_lea.vmem %s5, %s577
        $region52: #{tpu_custom_call.1} parent=27 // pred_fallthru
          _
        // Predicated region
        $region53: #{tpu_custom_call.1} parent=27 // pred_check
          %p579 = pneg %p234
        $region54: #{tpu_custom_call.1} parent=27 // pred_check_branch
          %581 = sbr.rel (%p579) target = $region56
        $region55: #{tpu_custom_call.1} parent=27 // pred_region
          %s582 = sand.u32 %s40, 1
          %s583 = scalar_lea.sflag [#allocation11], %s582
          %s584 = sand.u32 %s224, 1
          %s585 = smul.addr %s584, 4
          %s586 = scalar_lea.vmem [#allocation12], %s585
          %s588 = ssub.s32 64, 64
          %589 = vsyncadd %s583, %s588
          %s590 = sadd.s32 %s48, %s47
          %s591 = smul.addr %s590, 64
          %s592 = scalar_lea.hbm %s6, %s591
          %s594 = sshll.u32 %s586, 4
          %s595 = int_to_ptr.vmem [resolvable:$true] %s594
          %597 = dma.hbm_to_vmem [thread:$0]  %s592, 64, %s595, %s583
        $region56: #{tpu_custom_call.1} parent=27 // pred_fallthru
          _
        // Predicated region
        $region57: #{tpu_custom_call.1} parent=27 // pred_check
          %p598 = pneg %p260
        $region58: #{tpu_custom_call.1} parent=27 // pred_check_branch
          %600 = sbr.rel (%p598) target = $region60
        $region59: #{tpu_custom_call.1} parent=27 // pred_region
          %p601 = scmp.lt.s32.totalorder %s47, 1
          %s602 = scalar_select %p601, %s47, 1
          %s603 = smul.addr %s602, 4
          %s604 = scalar_lea.vmem %s7, %s603
        $region60: #{tpu_custom_call.1} parent=27 // pred_fallthru
          _
      $region28: #{tpu_custom_call.1} parent=5 // pred_fallthru
        _
      %p605 = scmp.le.s32.totalorder 1, %s40
      %p606 = scmp.lt.s32.totalorder %s40, 3
      %p607 = pnand %p605, %p606
      %p608 = pneg %p607
      // Predicated region
      $region61: #{tpu_custom_call.1} parent=5 // pred_check
        _
      $region62: #{tpu_custom_call.1} parent=5 // pred_check_branch
        %610 = sbr.rel (%p607) target = $region64
      $region63: #{tpu_custom_call.1} parent=5 // pred_region
        %s611 = ssub.s32 %s40, 1
        %s612 = sand.u32 %s67, 1
        %s613 = scalar_lea.sflag [#allocation5], %s612
        %s614 = sand.u32 %s67, 1
        %s615 = smul.addr %s614, 4
        %s616 = scalar_lea.vmem [#allocation4], %s615
        // Predicated region
        $region65: #{tpu_custom_call.1} parent=63 // pred_check
          %p617 = pneg %p80
        $region66: #{tpu_custom_call.1} parent=63 // pred_check_branch
          %619 = sbr.rel (%p617) target = $region68
        $region67: #{tpu_custom_call.1} parent=63 // pred_region
          %620 = dma.done %s613, 64
        $region68: #{tpu_custom_call.1} parent=63 // pred_fallthru
          _
        %s621 = sand.u32 %s45, 1
        %s622 = scalar_lea.sflag [#allocation8], %s621
        %s623 = sand.u32 %s93, 1
        %s624 = smul.addr %s623, 4
        %s625 = scalar_lea.vmem [#allocation7], %s624
        // Predicated region
        $region69: #{tpu_custom_call.1} parent=63 // pred_check
          %p626 = pneg %p106
        $region70: #{tpu_custom_call.1} parent=63 // pred_check_branch
          %628 = sbr.rel (%p626) target = $region72
        $region71: #{tpu_custom_call.1} parent=63 // pred_region
          %629 = dma.done %s622, 64
        $region72: #{tpu_custom_call.1} parent=63 // pred_fallthru
          _
        %s630 = sand.u32 %s45, 1
        %s631 = scalar_lea.sflag [#allocation8], %s630
        %s632 = sand.u32 %s119, 1
        %s633 = smul.addr %s632, 4
        %s634 = scalar_lea.vmem [#allocation9], %s633
        // Predicated region
        $region73: #{tpu_custom_call.1} parent=63 // pred_check
          %p635 = pneg %p132
        $region74: #{tpu_custom_call.1} parent=63 // pred_check_branch
          %637 = sbr.rel (%p635) target = $region76
        $region75: #{tpu_custom_call.1} parent=63 // pred_region
          %638 = dma.done %s631, 64
        $region76: #{tpu_custom_call.1} parent=63 // pred_fallthru
          _
        %s639 = sand.u32 %s45, 1
        %s640 = scalar_lea.sflag [#allocation11], %s639
        %s641 = sand.u32 %s173, 1
        %s642 = smul.addr %s641, 4
        %s643 = scalar_lea.vmem [#allocation10], %s642
        // Predicated region
        $region77: #{tpu_custom_call.1} parent=63 // pred_check
          %p644 = pneg %p186
        $region78: #{tpu_custom_call.1} parent=63 // pred_check_branch
          %646 = sbr.rel (%p644) target = $region80
        $region79: #{tpu_custom_call.1} parent=63 // pred_region
          %647 = dma.done %s640, 64
        $region80: #{tpu_custom_call.1} parent=63 // pred_fallthru
          _
        %s648 = sand.u32 %s45, 1
        %s649 = scalar_lea.sflag [#allocation11], %s648
        %s650 = sand.u32 %s227, 1
        %s651 = smul.addr %s650, 4
        %s652 = scalar_lea.vmem [#allocation12], %s651
        // Predicated region
        $region81: #{tpu_custom_call.1} parent=63 // pred_check
          %p653 = pneg %p240
        $region82: #{tpu_custom_call.1} parent=63 // pred_check_branch
          %655 = sbr.rel (%p653) target = $region84
        $region83: #{tpu_custom_call.1} parent=63 // pred_region
          %656 = dma.done %s649, 64
        $region84: #{tpu_custom_call.1} parent=63 // pred_fallthru
          _
        // Predicated region
        $region85: #{tpu_custom_call.1} parent=63 // pred_check
          %p657 = pneg %p287
        $region86: #{tpu_custom_call.1} parent=63 // pred_check_branch
          %659 = sbr.rel (%p657) target = $region88
        $region87: #{tpu_custom_call.1} parent=63 // pred_region
          %660 = dma.done [#allocation14], 64
        $region88: #{tpu_custom_call.1} parent=63 // pred_fallthru
          _
        // Predicated region
        $region89: #{tpu_custom_call.1} parent=63 // pred_check
          %p661 = pneg %p329
        $region90: #{tpu_custom_call.1} parent=63 // pred_check_branch
          %663 = sbr.rel (%p661) target = $region92
        $region91: #{tpu_custom_call.1} parent=63 // pred_region
          %664 = dma.done [#allocation14], 128
        $region92: #{tpu_custom_call.1} parent=63 // pred_fallthru
          _
        %s665 = sand.u32 %s67, 1
        %s666 = scalar_lea.sflag [#allocation5], %s665
        %s667 = sand.u32 %s67, 1
        %s668 = smul.addr %s667, 4
        %s669 = scalar_lea.vmem [#allocation4], %s668
        %p670 = pneg %p80
        %p671 = pneg %p77
        %s672 = sand.u32 %s45, 1
        %s673 = scalar_lea.sflag [#allocation8], %s672
        %s674 = sand.u32 %s93, 1
        %s675 = smul.addr %s674, 4
        %s676 = scalar_lea.vmem [#allocation7], %s675
        %p677 = pneg %p106
        %p678 = pneg %p103
        %s679 = sand.u32 %s45, 1
        %s680 = scalar_lea.sflag [#allocation8], %s679
        %s681 = sand.u32 %s119, 1
        %s682 = smul.addr %s681, 4
        %s683 = scalar_lea.vmem [#allocation9], %s682
        %p684 = pneg %p132
        %p685 = pneg %p129
        %p686 = scmp.lt.s32.totalorder %s49, 1
        %s687 = scalar_select %p686, %s49, 1
        %p688 = scmp.lt.s32.totalorder %s50, 0
        %s689 = scalar_select %p688, %s50, 0
        %s690 = sadd.s32 %s689, %s687
        %s691 = smul.addr %s690, 4
        %s692 = scalar_lea.vmem %s3, %s691
        %p693 = pneg %p160
        %p694 = pneg %p157
        %s695 = sand.u32 %s45, 1
        %s696 = scalar_lea.sflag [#allocation11], %s695
        %s697 = sand.u32 %s173, 1
        %s698 = smul.addr %s697, 4
        %s699 = scalar_lea.vmem [#allocation10], %s698
        %p700 = pneg %p186
        %p701 = pneg %p183
        %p702 = scmp.lt.s32.totalorder %s49, 1
        %s703 = scalar_select %p702, %s49, 1
        %s704 = smul.addr %s703, 4
        %s705 = scalar_lea.vmem %s5, %s704
        %p706 = pneg %p212
        %p707 = pneg %p209
        %s708 = sand.u32 %s45, 1
        %s709 = scalar_lea.sflag [#allocation11], %s708
        %s710 = sand.u32 %s227, 1
        %s711 = smul.addr %s710, 4
        %s712 = scalar_lea.vmem [#allocation12], %s711
        %p713 = pneg %p240
        %p714 = pneg %p237
        %p715 = scmp.lt.s32.totalorder %s49, 1
        %s716 = scalar_select %p715, %s49, 1
        %s717 = smul.addr %s716, 4
        %s718 = scalar_lea.vmem %s7, %s717
        %p719 = pneg %p266
        %p720 = pneg %p263
        %p721 = pneg %p287
        %p722 = pneg %p284
        %p723 = pneg %p308
        %p724 = pneg %p305
        %p725 = pneg %p329
        %p726 = pneg %p326
        %p727 = pneg %p357
        %p728 = pneg %p354
        %s729 = sand.u32 %s344, 1
        %s730 = scalar_lea.sflag [#allocation6], %s729
        %s731 = sand.u32 %s344, 1
        %s732 = smul.addr %s731, 8
        %s733 = scalar_lea.vmem [#allocation16], %s732
        %p734 = pneg %p385
        %p735 = pneg %p382
        %s736 = sand.u32 %s45, 1
        %s737 = scalar_lea.sflag [#allocation18], %s736
        %s738 = sand.u32 %s372, 1
        %s739 = smul.addr %s738, 8
        %s740 = scalar_lea.vmem [#allocation17], %s739
        %p741 = pneg %p413
        %p742 = pneg %p410
        %s743 = sand.u32 %s45, 1
        %s744 = scalar_lea.sflag [#allocation18], %s743
        %s745 = sand.u32 %s400, 1
        %s746 = smul.addr %s745, 8
        %s747 = scalar_lea.vmem [#allocation19], %s746
        %p748 = pneg %p441
        %p749 = pneg %p438
        %s750 = sand.u32 %s428, 1
        %s751 = scalar_lea.sflag [#allocation21], %s750
        %s752 = sand.u32 %s428, 1
        %s753 = smul.addr %s752, 8
        %s754 = scalar_lea.vmem [#allocation20], %s753
        %p755 = scmp.lt.s32.totalorder %s49, 1
        %s756 = scalar_select %p755, %s49, 1
        %p757 = scmp.lt.s32.totalorder %s50, 0
        %s758 = scalar_select %p757, %s50, 0
        %s759 = sadd.s32 %s758, %s756
        %s760 = smul.addr %s759, 4
        %s761 = scalar_lea.vmem %s3, %s760
        %p762 = scmp.lt.s32.totalorder %s49, 1
        %s763 = scalar_select %p762, %s49, 1
        %s764 = smul.addr %s763, 4
        %s765 = scalar_lea.vmem %s5, %s764
        %p766 = scmp.lt.s32.totalorder %s49, 1
        %s767 = scalar_select %p766, %s49, 1
        %s768 = smul.addr %s767, 4
        %s769 = scalar_lea.vmem %s7, %s768
        %v771 = vld [vmem:[%s616] sm:$0xf]
        %v772 = vld [vmem:[%s625] sm:$0xf]
        %v773 = vld [vmem:[%s634] sm:$0xf]
        %v774 = vld [vmem:[%s761] sm:$0xf]
        %v775 = vld [vmem:[%s643] sm:$0xf]
        %v776 = vld [vmem:[%s765] sm:$0xf]
        %v777 = vld [vmem:[%s652] sm:$0xf]
        %v778 = vld [vmem:[%s769] sm:$0xf]
        %vm779 = vcmask 64512
        %v781 = vsel %vm779, %v771, 0
        %v784 = vsel %vm779, %v772, 0
        %786 = vmatprep.subr.bf16.mxu0 0
        %787 = vmatpush1.bf16.xpose.msra.mxu0 %v784
        %788 = vmatprep.subr.bf16.mxu0 0
        %789 = vmatpush1.bf16.xpose.msra.mxu0 0
        %790 = vmatprep.subr.bf16.mxu0 0
        %791 = vmatpush1.bf16.xpose.msra.mxu0 0
        %792 = vmatprep.subr.bf16.mxu0 0
        %793 = vmatpush1.bf16.xpose.msra.mxu0 0
        %794 = vmatprep.subr.bf16.mxu0 0
        %795 = vmatpush1.bf16.xpose.msra.mxu0 0
        %796 = vmatprep.subr.bf16.mxu0 0
        %797 = vmatpush1.bf16.xpose.msra.mxu0 0
        %798 = vmatprep.subr.bf16.mxu0 0
        %799 = vmatpush1.bf16.xpose.msra.mxu0 0
        %800 = vmatprep.subr.bf16.mxu0 0
        %801 = vmatpush1.bf16.xpose.msra.mxu0 0
        %802 = vmatprep.subr.bf16.mxu0 0
        %803 = vmatpush1.bf16.xpose.msra.mxu0 0
        %804 = vmatprep.subr.bf16.mxu0 0
        %805 = vmatpush1.bf16.xpose.msra.mxu0 0
        %806 = vmatprep.subr.bf16.mxu0 0
        %807 = vmatpush1.bf16.xpose.msra.mxu0 0
        %808 = vmatprep.subr.bf16.mxu0 0
        %809 = vmatpush1.bf16.xpose.msra.mxu0 0
        %810 = vmatprep.subr.bf16.mxu0 0
        %811 = vmatpush1.bf16.xpose.msra.mxu0 0
        %812 = vmatprep.subr.bf16.mxu0 0
        %813 = vmatpush1.bf16.xpose.msra.mxu0 0
        %814 = vmatprep.subr.bf16.mxu0 0
        %815 = vmatpush1.bf16.xpose.msra.mxu0 0
        %816 = vmatprep.subr.bf16.mxu0 0
        %817 = vmatpush1.bf16.xpose.msra.mxu0 0
        %818 = vmatprep.mubr.bf16.mxu0 0
        %819 = vmatmul.mubr.bf16.gmra.mrb[0].mxu0 %v781
        %v820 = vpop.f32.mrb[0].mxu0
        %v821 = vadd.f32 0.0, %v820
        %v822 = vpop.f32.mrb[0].mxu0
        %v823 = vpop.f32.mrb[0].mxu0
        %v824 = vpop.f32.mrb[0].mxu0
        %825 = vdwg.mxu0
        %v826 = vsel %vm779, %v821, -inf
        %827 = vmax.xlane.f32.xlu0 %v826
        %v828 = vpop.xlane.xlu0 %827
        %v829 = vsub.f32 %v821, %v828
        %v830 = vmul.f32 %v829, 1.442695
        %v831 = vpow.pop %v830
        %v832 = vsel %vm779, %v831, 0.0
        %833 = vadd.xlane.f32.xlu0 %v832
        %v834 = vpop.xlane.xlu0 %833
        %v835 = vrcp.pop %v834
        %v836 = vmul.f32 %v831, %v835
        %v837 = vpack.c.bf16 %v836, %v836
        %vm838 = vcmask 60416
        %839 = vst.msk [vmem:[%s740] sm:$0xf] %vm838, %v837
        %v841 = vsel %vm779, %v837, 0
        %vm843 = vcmask 1043456
        %v845 = vsel %vm843, %v773, 0
        %847 = vmatprep.subr.bf16.mxu0 0
        %848 = vmatpush1.bf16.msra.mxu0 %v845
        %849 = vmatprep.subr.bf16.mxu0 0
        %850 = vmatpush1.bf16.msra.mxu0 0
        %851 = vmatprep.subr.bf16.mxu0 0
        %852 = vmatpush1.bf16.msra.mxu0 0
        %853 = vmatprep.subr.bf16.mxu0 0
        %854 = vmatpush1.bf16.msra.mxu0 0
        %855 = vmatprep.subr.bf16.mxu0 0
        %856 = vmatpush1.bf16.msra.mxu0 0
        %857 = vmatprep.subr.bf16.mxu0 0
        %858 = vmatpush1.bf16.msra.mxu0 0
        %859 = vmatprep.subr.bf16.mxu0 0
        %860 = vmatpush1.bf16.msra.mxu0 0
        %861 = vmatprep.subr.bf16.mxu0 0
        %862 = vmatpush1.bf16.msra.mxu0 0
        %863 = vmatprep.subr.bf16.mxu0 0
        %864 = vmatpush1.bf16.msra.mxu0 0
        %865 = vmatprep.subr.bf16.mxu0 0
        %866 = vmatpush1.bf16.msra.mxu0 0
        %867 = vmatprep.subr.bf16.mxu0 0
        %868 = vmatpush1.bf16.msra.mxu0 0
        %869 = vmatprep.subr.bf16.mxu0 0
        %870 = vmatpush1.bf16.msra.mxu0 0
        %871 = vmatprep.subr.bf16.mxu0 0
        %872 = vmatpush1.bf16.msra.mxu0 0
        %873 = vmatprep.subr.bf16.mxu0 0
        %874 = vmatpush1.bf16.msra.mxu0 0
        %875 = vmatprep.subr.bf16.mxu0 0
        %876 = vmatpush1.bf16.msra.mxu0 0
        %877 = vmatprep.subr.bf16.mxu0 0
        %878 = vmatpush1.bf16.msra.mxu0 0
        %879 = vmatprep.mubr.bf16.mxu0 0
        %880 = vmatmul.mubr.bf16.gmra.mrb[0].mxu0 %v841
        %v881 = vpop.f32.mrb[0].mxu0
        %v882 = vadd.f32 0.0, %v881
        %v883 = vpop.f32.mrb[0].mxu0
        %v884 = vpop.f32.mrb[0].mxu0
        %v885 = vpop.f32.mrb[0].mxu0
        %886 = vdwg.mxu0
        %887 = vst.msk [vmem:[#allocation2] sm:$0xff] %vm779, %v882
        %v889 = vunpack.c.l.b16 %v771
        %v890 = vpack.c.b16 %v889, %v889
        %891 = vrot.lane.b32.xlu0 %v890, 120
        %v892 = vpop.permute.xlu0 %891
        %v894 = vunpack.c.l.b16 %v772
        %v895 = vpack.c.b16 %v894, %v894
        %896 = vrot.lane.b32.xlu0 %v895, 120
        %v897 = vpop.permute.xlu0 %896
        %v899 = vsel %vm779, %v892, 0
        %v902 = vsel %vm779, %v897, 0
        %904 = vmatprep.subr.bf16.mxu0 0
        %905 = vmatpush1.bf16.xpose.msra.mxu0 %v902
        %906 = vmatprep.subr.bf16.mxu0 0
        %907 = vmatpush1.bf16.xpose.msra.mxu0 0
        %908 = vmatprep.subr.bf16.mxu0 0
        %909 = vmatpush1.bf16.xpose.msra.mxu0 0
        %910 = vmatprep.subr.bf16.mxu0 0
        %911 = vmatpush1.bf16.xpose.msra.mxu0 0
        %912 = vmatprep.subr.bf16.mxu0 0
        %913 = vmatpush1.bf16.xpose.msra.mxu0 0
        %914 = vmatprep.subr.bf16.mxu0 0
        %915 = vmatpush1.bf16.xpose.msra.mxu0 0
        %916 = vmatprep.subr.bf16.mxu0 0
        %917 = vmatpush1.bf16.xpose.msra.mxu0 0
        %918 = vmatprep.subr.bf16.mxu0 0
        %919 = vmatpush1.bf16.xpose.msra.mxu0 0
        %920 = vmatprep.subr.bf16.mxu0 0
        %921 = vmatpush1.bf16.xpose.msra.mxu0 0
        %922 = vmatprep.subr.bf16.mxu0 0
        %923 = vmatpush1.bf16.xpose.msra.mxu0 0
        %924 = vmatprep.subr.bf16.mxu0 0
        %925 = vmatpush1.bf16.xpose.msra.mxu0 0
        %926 = vmatprep.subr.bf16.mxu0 0
        %927 = vmatpush1.bf16.xpose.msra.mxu0 0
        %928 = vmatprep.subr.bf16.mxu0 0
        %929 = vmatpush1.bf16.xpose.msra.mxu0 0
        %930 = vmatprep.subr.bf16.mxu0 0
        %931 = vmatpush1.bf16.xpose.msra.mxu0 0
        %932 = vmatprep.subr.bf16.mxu0 0
        %933 = vmatpush1.bf16.xpose.msra.mxu0 0
        %934 = vmatprep.subr.bf16.mxu0 0
        %935 = vmatpush1.bf16.xpose.msra.mxu0 0
        %936 = vmatprep.mubr.bf16.mxu0 0
        %937 = vmatmul.mubr.bf16.gmra.mrb[0].mxu0 %v899
        %v938 = vpop.f32.mrb[0].mxu0
        %v939 = vadd.f32 0.0, %v938
        %v940 = vpop.f32.mrb[0].mxu0
        %v941 = vpop.f32.mrb[0].mxu0
        %v942 = vpop.f32.mrb[0].mxu0
        %943 = vdwg.mxu0
        %v944 = vsel %vm779, %v939, -inf
        %945 = vmax.xlane.f32.xlu0 %v944
        %v946 = vpop.xlane.xlu0 %945
        %v947 = vsub.f32 %v939, %v946
        %v948 = vmul.f32 %v947, 1.442695
        %v949 = vpow.pop %v948
        %v950 = vsel %vm779, %v949, 0.0
        %951 = vadd.xlane.f32.xlu0 %v950
        %v952 = vpop.xlane.xlu0 %951
        %v953 = vrcp.pop %v952
        %v954 = vmul.f32 %v949, %v953
        %v955 = vpack.c.bf16 %v954, %v954
        %s956 = scalar_lea.vmem %s740, 4 [#allocation17]
        %957 = vst.msk [vmem:[%s956] sm:$0xf] %vm838, %v955
        %v959 = vunpack.c.l.b16 %v773
        %v960 = vpack.c.b16 %v959, %v959
        %961 = vrot.lane.b32.xlu0 %v960, 120
        %v962 = vpop.permute.xlu0 %961
        %v964 = vsel %vm779, %v955, 0
        %v967 = vsel %vm843, %v962, 0
        %969 = vmatprep.subr.bf16.mxu0 0
        %970 = vmatpush1.bf16.msra.mxu0 %v967
        %971 = vmatprep.subr.bf16.mxu0 0
        %972 = vmatpush1.bf16.msra.mxu0 0
        %973 = vmatprep.subr.bf16.mxu0 0
        %974 = vmatpush1.bf16.msra.mxu0 0
        %975 = vmatprep.subr.bf16.mxu0 0
        %976 = vmatpush1.bf16.msra.mxu0 0
        %977 = vmatprep.subr.bf16.mxu0 0
        %978 = vmatpush1.bf16.msra.mxu0 0
        %979 = vmatprep.subr.bf16.mxu0 0
        %980 = vmatpush1.bf16.msra.mxu0 0
        %981 = vmatprep.subr.bf16.mxu0 0
        %982 = vmatpush1.bf16.msra.mxu0 0
        %983 = vmatprep.subr.bf16.mxu0 0
        %984 = vmatpush1.bf16.msra.mxu0 0
        %985 = vmatprep.subr.bf16.mxu0 0
        %986 = vmatpush1.bf16.msra.mxu0 0
        %987 = vmatprep.subr.bf16.mxu0 0
        %988 = vmatpush1.bf16.msra.mxu0 0
        %989 = vmatprep.subr.bf16.mxu0 0
        %990 = vmatpush1.bf16.msra.mxu0 0
        %991 = vmatprep.subr.bf16.mxu0 0
        %992 = vmatpush1.bf16.msra.mxu0 0
        %993 = vmatprep.subr.bf16.mxu0 0
        %994 = vmatpush1.bf16.msra.mxu0 0
        %995 = vmatprep.subr.bf16.mxu0 0
        %996 = vmatpush1.bf16.msra.mxu0 0
        %997 = vmatprep.subr.bf16.mxu0 0
        %998 = vmatpush1.bf16.msra.mxu0 0
        %999 = vmatprep.subr.bf16.mxu0 0
        %1000 = vmatpush1.bf16.msra.mxu0 0
        %1001 = vmatprep.mubr.bf16.mxu0 0
        %1002 = vmatmul.mubr.bf16.gmra.mrb[0].mxu0 %v964
        %v1003 = vpop.f32.mrb[0].mxu0
        %v1004 = vadd.f32 0.0, %v1003
        %v1005 = vpop.f32.mrb[0].mxu0
        %v1006 = vpop.f32.mrb[0].mxu0
        %v1007 = vpop.f32.mrb[0].mxu0
        %1008 = vdwg.mxu0
        %1010 = vrot.lane.b32.xlu0 %v1004, 8
        %v1011 = vpop.permute.xlu0 %1010
        %vm1013 = vcmask 130112
        %1014 = vst.msk [vmem:[#allocation2] sm:$0xff] %vm1013, %v1011
        %v1015 = vld [vmem:[#allocation2] sm:$0xff]
        %v1016 = vpack.c.bf16 %v1015, %v1015
        %v1017 = vld [vmem:[%s9] sm:$0xf]
        %v1018 = vld [vmem:[%s9 + $0x4] sm:$0xf]
        %v1021 = vunpack.c.l.b16 %v1017
        %v1022 = vunpack.c.l.b16 %v1018
        %v1023 = vpack.c.b16 %v1022, %v1021
        %vm1025 = vcmask 130048
        %v1027 = vsel %vm1025, %v1016, 0
        %1029 = vmatprep.subr.bf16.mxu0 0
        %1030 = vmatpush1.bf16.msra.mxu0 %v1023
        %1031 = vmatprep.subr.bf16.mxu0 0
        %1032 = vmatpush1.bf16.msra.mxu0 0
        %1033 = vmatprep.subr.bf16.mxu0 0
        %1034 = vmatpush1.bf16.msra.mxu0 0
        %1035 = vmatprep.subr.bf16.mxu0 0
        %1036 = vmatpush1.bf16.msra.mxu0 0
        %1037 = vmatprep.subr.bf16.mxu0 0
        %1038 = vmatpush1.bf16.msra.mxu0 0
        %1039 = vmatprep.subr.bf16.mxu0 0
        %1040 = vmatpush1.bf16.msra.mxu0 0
        %1041 = vmatprep.subr.bf16.mxu0 0
        %1042 = vmatpush1.bf16.msra.mxu0 0
        %1043 = vmatprep.subr.bf16.mxu0 0
        %1044 = vmatpush1.bf16.msra.mxu0 0
        %1045 = vmatprep.subr.bf16.mxu0 0
        %1046 = vmatpush1.bf16.msra.mxu0 0
        %1047 = vmatprep.subr.bf16.mxu0 0
        %1048 = vmatpush1.bf16.msra.mxu0 0
        %1049 = vmatprep.subr.bf16.mxu0 0
        %1050 = vmatpush1.bf16.msra.mxu0 0
        %1051 = vmatprep.subr.bf16.mxu0 0
        %1052 = vmatpush1.bf16.msra.mxu0 0
        %1053 = vmatprep.subr.bf16.mxu0 0
        %1054 = vmatpush1.bf16.msra.mxu0 0
        %1055 = vmatprep.subr.bf16.mxu0 0
        %1056 = vmatpush1.bf16.msra.mxu0 0
        %1057 = vmatprep.subr.bf16.mxu0 0
        %1058 = vmatpush1.bf16.msra.mxu0 0
        %1059 = vmatprep.subr.bf16.mxu0 0
        %1060 = vmatpush1.bf16.msra.mxu0 0
        %1061 = vmatprep.mubr.bf16.mxu0 0
        %1062 = vmatmul.mubr.bf16.gmra.mrb[0].mxu0 %v1027
        %v1063 = vpop.f32.mrb[0].mxu0
        %v1064 = vadd.f32 0.0, %v1063
        %v1065 = vpop.f32.mrb[0].mxu0
        %v1066 = vpop.f32.mrb[0].mxu0
        %v1067 = vpop.f32.mrb[0].mxu0
        %1068 = vdwg.mxu0
        %v1070 = vsel %vm779, %v777, 0
        %v1073 = vsel %vm779, %v778, 0
        %1075 = vmatprep.subr.bf16.mxu0 0
        %1076 = vmatpush1.bf16.xpose.msra.mxu0 %v1073
        %1077 = vmatprep.subr.bf16.mxu0 0
        %1078 = vmatpush1.bf16.xpose.msra.mxu0 0
        %1079 = vmatprep.subr.bf16.mxu0 0
        %1080 = vmatpush1.bf16.xpose.msra.mxu0 0
        %1081 = vmatprep.subr.bf16.mxu0 0
        %1082 = vmatpush1.bf16.xpose.msra.mxu0 0
        %1083 = vmatprep.subr.bf16.mxu0 0
        %1084 = vmatpush1.bf16.xpose.msra.mxu0 0
        %1085 = vmatprep.subr.bf16.mxu0 0
        %1086 = vmatpush1.bf16.xpose.msra.mxu0 0
        %1087 = vmatprep.subr.bf16.mxu0 0
        %1088 = vmatpush1.bf16.xpose.msra.mxu0 0
        %1089 = vmatprep.subr.bf16.mxu0 0
        %1090 = vmatpush1.bf16.xpose.msra.mxu0 0
        %1091 = vmatprep.subr.bf16.mxu0 0
        %1092 = vmatpush1.bf16.xpose.msra.mxu0 0
        %1093 = vmatprep.subr.bf16.mxu0 0
        %1094 = vmatpush1.bf16.xpose.msra.mxu0 0
        %1095 = vmatprep.subr.bf16.mxu0 0
        %1096 = vmatpush1.bf16.xpose.msra.mxu0 0
        %1097 = vmatprep.subr.bf16.mxu0 0
        %1098 = vmatpush1.bf16.xpose.msra.mxu0 0
        %1099 = vmatprep.subr.bf16.mxu0 0
        %1100 = vmatpush1.bf16.xpose.msra.mxu0 0
        %1101 = vmatprep.subr.bf16.mxu0 0
        %1102 = vmatpush1.bf16.xpose.msra.mxu0 0
        %1103 = vmatprep.subr.bf16.mxu0 0
        %1104 = vmatpush1.bf16.xpose.msra.mxu0 0
        %1105 = vmatprep.subr.bf16.mxu0 0
        %1106 = vmatpush1.bf16.xpose.msra.mxu0 0
        %1107 = vmatprep.mubr.bf16.mxu0 0
        %1108 = vmatmul.mubr.bf16.gmra.mrb[0].mxu0 %v1070
        %v1109 = vpop.f32.mrb[0].mxu0
        %v1110 = vadd.f32 0.0, %v1109
        %v1111 = vpop.f32.mrb[0].mxu0
        %v1112 = vpop.f32.mrb[0].mxu0
        %v1113 = vpop.f32.mrb[0].mxu0
        %1114 = vdwg.mxu0
        %v1115 = vpack.c.bf16 %v1110, %v1110
        %1116 = vst.msk [vmem:[%s754] sm:$0xf] %vm838, %v1115
        %v1118 = vunpack.c.l.b16 %v777
        %v1119 = vpack.c.b16 %v1118, %v1118
        %1120 = vrot.lane.b32.xlu0 %v1119, 120
        %v1121 = vpop.permute.xlu0 %1120
        %v1123 = vunpack.c.l.b16 %v778
        %v1124 = vpack.c.b16 %v1123, %v1123
        %1125 = vrot.lane.b32.xlu0 %v1124, 120
        %v1126 = vpop.permute.xlu0 %1125
        %v1128 = vsel %vm779, %v1121, 0
        %v1131 = vsel %vm779, %v1126, 0
        %1133 = vmatprep.subr.bf16.mxu0 0
        %1134 = vmatpush1.bf16.xpose.msra.mxu0 %v1131
        %1135 = vmatprep.subr.bf16.mxu0 0
        %1136 = vmatpush1.bf16.xpose.msra.mxu0 0
        %1137 = vmatprep.subr.bf16.mxu0 0
        %1138 = vmatpush1.bf16.xpose.msra.mxu0 0
        %1139 = vmatprep.subr.bf16.mxu0 0
        %1140 = vmatpush1.bf16.xpose.msra.mxu0 0
        %1141 = vmatprep.subr.bf16.mxu0 0
        %1142 = vmatpush1.bf16.xpose.msra.mxu0 0
        %1143 = vmatprep.subr.bf16.mxu0 0
        %1144 = vmatpush1.bf16.xpose.msra.mxu0 0
        %1145 = vmatprep.subr.bf16.mxu0 0
        %1146 = vmatpush1.bf16.xpose.msra.mxu0 0
        %1147 = vmatprep.subr.bf16.mxu0 0
        %1148 = vmatpush1.bf16.xpose.msra.mxu0 0
        %1149 = vmatprep.subr.bf16.mxu0 0
        %1150 = vmatpush1.bf16.xpose.msra.mxu0 0
        %1151 = vmatprep.subr.bf16.mxu0 0
        %1152 = vmatpush1.bf16.xpose.msra.mxu0 0
        %1153 = vmatprep.subr.bf16.mxu0 0
        %1154 = vmatpush1.bf16.xpose.msra.mxu0 0
        %1155 = vmatprep.subr.bf16.mxu0 0
        %1156 = vmatpush1.bf16.xpose.msra.mxu0 0
        %1157 = vmatprep.subr.bf16.mxu0 0
        %1158 = vmatpush1.bf16.xpose.msra.mxu0 0
        %1159 = vmatprep.subr.bf16.mxu0 0
        %1160 = vmatpush1.bf16.xpose.msra.mxu0 0
        %1161 = vmatprep.subr.bf16.mxu0 0
        %1162 = vmatpush1.bf16.xpose.msra.mxu0 0
        %1163 = vmatprep.subr.bf16.mxu0 0
        %1164 = vmatpush1.bf16.xpose.msra.mxu0 0
        %1165 = vmatprep.mubr.bf16.mxu0 0
        %1166 = vmatmul.mubr.bf16.gmra.mrb[0].mxu0 %v1128
        %v1167 = vpop.f32.mrb[0].mxu0
        %v1168 = vadd.f32 0.0, %v1167
        %v1169 = vpop.f32.mrb[0].mxu0
        %v1170 = vpop.f32.mrb[0].mxu0
        %v1171 = vpop.f32.mrb[0].mxu0
        %1172 = vdwg.mxu0
        %v1173 = vpack.c.bf16 %v1168, %v1168
        %s1174 = scalar_lea.vmem %s754, 4 [#allocation20]
        %1175 = vst.msk [vmem:[%s1174] sm:$0xf] %vm838, %v1173
        %v1177 = vsel %vm779, %v774, 0
        %v1180 = vsel %vm779, %v775, 0
        %1182 = vmatprep.subr.bf16.mxu0 0
        %1183 = vmatpush1.bf16.xpose.msra.mxu0 %v1180
        %1184 = vmatprep.subr.bf16.mxu0 0
        %1185 = vmatpush1.bf16.xpose.msra.mxu0 0
        %1186 = vmatprep.subr.bf16.mxu0 0
        %1187 = vmatpush1.bf16.xpose.msra.mxu0 0
        %1188 = vmatprep.subr.bf16.mxu0 0
        %1189 = vmatpush1.bf16.xpose.msra.mxu0 0
        %1190 = vmatprep.subr.bf16.mxu0 0
        %1191 = vmatpush1.bf16.xpose.msra.mxu0 0
        %1192 = vmatprep.subr.bf16.mxu0 0
        %1193 = vmatpush1.bf16.xpose.msra.mxu0 0
        %1194 = vmatprep.subr.bf16.mxu0 0
        %1195 = vmatpush1.bf16.xpose.msra.mxu0 0
        %1196 = vmatprep.subr.bf16.mxu0 0
        %1197 = vmatpush1.bf16.xpose.msra.mxu0 0
        %1198 = vmatprep.subr.bf16.mxu0 0
        %1199 = vmatpush1.bf16.xpose.msra.mxu0 0
        %1200 = vmatprep.subr.bf16.mxu0 0
        %1201 = vmatpush1.bf16.xpose.msra.mxu0 0
        %1202 = vmatprep.subr.bf16.mxu0 0
        %1203 = vmatpush1.bf16.xpose.msra.mxu0 0
        %1204 = vmatprep.subr.bf16.mxu0 0
        %1205 = vmatpush1.bf16.xpose.msra.mxu0 0
        %1206 = vmatprep.subr.bf16.mxu0 0
        %1207 = vmatpush1.bf16.xpose.msra.mxu0 0
        %1208 = vmatprep.subr.bf16.mxu0 0
        %1209 = vmatpush1.bf16.xpose.msra.mxu0 0
        %1210 = vmatprep.subr.bf16.mxu0 0
        %1211 = vmatpush1.bf16.xpose.msra.mxu0 0
        %1212 = vmatprep.subr.bf16.mxu0 0
        %1213 = vmatpush1.bf16.xpose.msra.mxu0 0
        %1214 = vmatprep.mubr.bf16.mxu0 0
        %1215 = vmatmul.mubr.bf16.gmra.mrb[0].mxu0 %v1177
        %v1216 = vpop.f32.mrb[0].mxu0
        %v1217 = vadd.f32 0.0, %v1216
        %v1218 = vpop.f32.mrb[0].mxu0
        %v1219 = vpop.f32.mrb[0].mxu0
        %v1220 = vpop.f32.mrb[0].mxu0
        %1221 = vdwg.mxu0
        %v1222 = vsel %vm779, %v1217, -inf
        %1223 = vmax.xlane.f32.xlu0 %v1222
        %v1224 = vpop.xlane.xlu0 %1223
        %v1225 = vsub.f32 %v1217, %v1224
        %v1226 = vmul.f32 %v1225, 1.442695
        %v1227 = vpow.pop %v1226
        %v1228 = vsel %vm779, %v1227, 0.0
        %1229 = vadd.xlane.f32.xlu0 %v1228
        %v1230 = vpop.xlane.xlu0 %1229
        %v1231 = vrcp.pop %v1230
        %v1232 = vmul.f32 %v1227, %v1231
        %v1233 = vpack.c.bf16 %v1232, %v1232
        %1234 = vst.msk [vmem:[%s747] sm:$0xf] %vm838, %v1233
        %v1235 = vld [vmem:[#allocation13] sm:$0x3]
        %v1236 = vld [vmem:[%s754] sm:$0xf]
        %v1237 = vunpack.c.l.bf16 %v1236
        %v1238 = vmul.f32 %v1232, %v1237
        %v1239 = vsel %vm779, %v1238, 0.0
        %1240 = vadd.xlane.f32.xlu0 %v1239
        %v1241 = vpop.xlane.xlu0 %1240
        %v1242 = vlaneseq
        %v1243 = vshrl.u32 %v1242, 7
        %v1244 = vsub.s32 0, %v1243
        %v1245 = vrot.slane %v1235, %v1244
        %v1246 = vmul.f32 %v1241, %v1245
        %v1248 = vsel %vm779, %v1233, 0
        %v1251 = vsel %vm843, %v776, 0
        %1253 = vmatprep.subr.bf16.mxu0 0
        %1254 = vmatpush1.bf16.msra.mxu0 %v1251
        %1255 = vmatprep.subr.bf16.mxu0 0
        %1256 = vmatpush1.bf16.msra.mxu0 0
        %1257 = vmatprep.subr.bf16.mxu0 0
        %1258 = vmatpush1.bf16.msra.mxu0 0
        %1259 = vmatprep.subr.bf16.mxu0 0
        %1260 = vmatpush1.bf16.msra.mxu0 0
        %1261 = vmatprep.subr.bf16.mxu0 0
        %1262 = vmatpush1.bf16.msra.mxu0 0
        %1263 = vmatprep.subr.bf16.mxu0 0
        %1264 = vmatpush1.bf16.msra.mxu0 0
        %1265 = vmatprep.subr.bf16.mxu0 0
        %1266 = vmatpush1.bf16.msra.mxu0 0
        %1267 = vmatprep.subr.bf16.mxu0 0
        %1268 = vmatpush1.bf16.msra.mxu0 0
        %1269 = vmatprep.subr.bf16.mxu0 0
        %1270 = vmatpush1.bf16.msra.mxu0 0
        %1271 = vmatprep.subr.bf16.mxu0 0
        %1272 = vmatpush1.bf16.msra.mxu0 0
        %1273 = vmatprep.subr.bf16.mxu0 0
        %1274 = vmatpush1.bf16.msra.mxu0 0
        %1275 = vmatprep.subr.bf16.mxu0 0
        %1276 = vmatpush1.bf16.msra.mxu0 0
        %1277 = vmatprep.subr.bf16.mxu0 0
        %1278 = vmatpush1.bf16.msra.mxu0 0
        %1279 = vmatprep.subr.bf16.mxu0 0
        %1280 = vmatpush1.bf16.msra.mxu0 0
        %1281 = vmatprep.subr.bf16.mxu0 0
        %1282 = vmatpush1.bf16.msra.mxu0 0
        %1283 = vmatprep.subr.bf16.mxu0 0
        %1284 = vmatpush1.bf16.msra.mxu0 0
        %1285 = vmatprep.mubr.bf16.mxu0 0
        %1286 = vmatmul.mubr.bf16.gmra.mrb[0].mxu0 %v1248
        %v1287 = vpop.f32.mrb[0].mxu0
        %v1288 = vadd.f32 %v1246, %v1287
        %v1289 = vpop.f32.mrb[0].mxu0
        %v1290 = vpop.f32.mrb[0].mxu0
        %v1291 = vpop.f32.mrb[0].mxu0
        %1292 = vdwg.mxu0
        %v1293 = vld [vmem:[%s1174] sm:$0xf]
        %v1294 = vunpack.c.l.bf16 %v1293
        %v1295 = vmul.f32 %v1232, %v1294
        %v1296 = vsel %vm779, %v1295, 0.0
        %1297 = vadd.xlane.f32.xlu0 %v1296
        %v1298 = vpop.xlane.xlu0 %1297
        %v1299 = vlaneseq
        %v1300 = vshrl.u32 %v1299, 7
        %v1301 = vsub.s32 1, %v1300
        %v1302 = vrot.slane %v1235, %v1301
        %v1303 = vmul.f32 %v1298, %v1302
        %v1304 = vadd.f32 %v1288, %v1303
        %1305 = vst.msk [vmem:[#allocation3] sm:$0xff] %vm779, %v1304
        %v1307 = vunpack.c.l.b16 %v774
        %v1308 = vpack.c.b16 %v1307, %v1307
        %1309 = vrot.lane.b32.xlu0 %v1308, 120
        %v1310 = vpop.permute.xlu0 %1309
        %v1312 = vunpack.c.l.b16 %v775
        %v1313 = vpack.c.b16 %v1312, %v1312
        %1314 = vrot.lane.b32.xlu0 %v1313, 120
        %v1315 = vpop.permute.xlu0 %1314
        %v1317 = vsel %vm779, %v1310, 0
        %v1320 = vsel %vm779, %v1315, 0
        %1322 = vmatprep.subr.bf16.mxu0 0
        %1323 = vmatpush1.bf16.xpose.msra.mxu0 %v1320
        %1324 = vmatprep.subr.bf16.mxu0 0
        %1325 = vmatpush1.bf16.xpose.msra.mxu0 0
        %1326 = vmatprep.subr.bf16.mxu0 0
        %1327 = vmatpush1.bf16.xpose.msra.mxu0 0
        %1328 = vmatprep.subr.bf16.mxu0 0
        %1329 = vmatpush1.bf16.xpose.msra.mxu0 0
        %1330 = vmatprep.subr.bf16.mxu0 0
        %1331 = vmatpush1.bf16.xpose.msra.mxu0 0
        %1332 = vmatprep.subr.bf16.mxu0 0
        %1333 = vmatpush1.bf16.xpose.msra.mxu0 0
        %1334 = vmatprep.subr.bf16.mxu0 0
        %1335 = vmatpush1.bf16.xpose.msra.mxu0 0
        %1336 = vmatprep.subr.bf16.mxu0 0
        %1337 = vmatpush1.bf16.xpose.msra.mxu0 0
        %1338 = vmatprep.subr.bf16.mxu0 0
        %1339 = vmatpush1.bf16.xpose.msra.mxu0 0
        %1340 = vmatprep.subr.bf16.mxu0 0
        %1341 = vmatpush1.bf16.xpose.msra.mxu0 0
        %1342 = vmatprep.subr.bf16.mxu0 0
        %1343 = vmatpush1.bf16.xpose.msra.mxu0 0
        %1344 = vmatprep.subr.bf16.mxu0 0
        %1345 = vmatpush1.bf16.xpose.msra.mxu0 0
        %1346 = vmatprep.subr.bf16.mxu0 0
        %1347 = vmatpush1.bf16.xpose.msra.mxu0 0
        %1348 = vmatprep.subr.bf16.mxu0 0
        %1349 = vmatpush1.bf16.xpose.msra.mxu0 0
        %1350 = vmatprep.subr.bf16.mxu0 0
        %1351 = vmatpush1.bf16.xpose.msra.mxu0 0
        %1352 = vmatprep.subr.bf16.mxu0 0
        %1353 = vmatpush1.bf16.xpose.msra.mxu0 0
        %1354 = vmatprep.mubr.bf16.mxu0 0
        %1355 = vmatmul.mubr.bf16.gmra.mrb[0].mxu0 %v1317
        %v1356 = vpop.f32.mrb[0].mxu0
        %v1357 = vadd.f32 0.0, %v1356
        %v1358 = vpop.f32.mrb[0].mxu0
        %v1359 = vpop.f32.mrb[0].mxu0
        %v1360 = vpop.f32.mrb[0].mxu0
        %1361 = vdwg.mxu0
        %v1362 = vsel %vm779, %v1357, -inf
        %1363 = vmax.xlane.f32.xlu0 %v1362
        %v1364 = vpop.xlane.xlu0 %1363
        %v1365 = vsub.f32 %v1357, %v1364
        %v1366 = vmul.f32 %v1365, 1.442695
        %v1367 = vpow.pop %v1366
        %v1368 = vsel %vm779, %v1367, 0.0
        %1369 = vadd.xlane.f32.xlu0 %v1368
        %v1370 = vpop.xlane.xlu0 %1369
        %v1371 = vrcp.pop %v1370
        %v1372 = vmul.f32 %v1367, %v1371
        %v1373 = vpack.c.bf16 %v1372, %v1372
        %s1374 = scalar_lea.vmem %s747, 4 [#allocation19]
        %1375 = vst.msk [vmem:[%s1374] sm:$0xf] %vm838, %v1373
        %s1376 = scalar_lea.vmem [#allocation13], 2
        %v1377 = vld [vmem:[%s1376] sm:$0x3]
        %v1378 = vld [vmem:[%s754] sm:$0xf]
        %v1379 = vunpack.c.l.bf16 %v1378
        %v1380 = vmul.f32 %v1372, %v1379
        %v1381 = vsel %vm779, %v1380, 0.0
        %1382 = vadd.xlane.f32.xlu0 %v1381
        %v1383 = vpop.xlane.xlu0 %1382
        %v1384 = vlaneseq
        %v1385 = vshrl.u32 %v1384, 7
        %v1386 = vsub.s32 0, %v1385
        %v1387 = vrot.slane %v1377, %v1386
        %v1388 = vmul.f32 %v1383, %v1387
        %v1390 = vunpack.c.l.b16 %v776
        %v1391 = vpack.c.b16 %v1390, %v1390
        %1392 = vrot.lane.b32.xlu0 %v1391, 120
        %v1393 = vpop.permute.xlu0 %1392
        %v1395 = vsel %vm779, %v1373, 0
        %v1398 = vsel %vm843, %v1393, 0
        %1400 = vmatprep.subr.bf16.mxu0 0
        %1401 = vmatpush1.bf16.msra.mxu0 %v1398
        %1402 = vmatprep.subr.bf16.mxu0 0
        %1403 = vmatpush1.bf16.msra.mxu0 0
        %1404 = vmatprep.subr.bf16.mxu0 0
        %1405 = vmatpush1.bf16.msra.mxu0 0
        %1406 = vmatprep.subr.bf16.mxu0 0
        %1407 = vmatpush1.bf16.msra.mxu0 0
        %1408 = vmatprep.subr.bf16.mxu0 0
        %1409 = vmatpush1.bf16.msra.mxu0 0
        %1410 = vmatprep.subr.bf16.mxu0 0
        %1411 = vmatpush1.bf16.msra.mxu0 0
        %1412 = vmatprep.subr.bf16.mxu0 0
        %1413 = vmatpush1.bf16.msra.mxu0 0
        %1414 = vmatprep.subr.bf16.mxu0 0
        %1415 = vmatpush1.bf16.msra.mxu0 0
        %1416 = vmatprep.subr.bf16.mxu0 0
        %1417 = vmatpush1.bf16.msra.mxu0 0
        %1418 = vmatprep.subr.bf16.mxu0 0
        %1419 = vmatpush1.bf16.msra.mxu0 0
        %1420 = vmatprep.subr.bf16.mxu0 0
        %1421 = vmatpush1.bf16.msra.mxu0 0
        %1422 = vmatprep.subr.bf16.mxu0 0
        %1423 = vmatpush1.bf16.msra.mxu0 0
        %1424 = vmatprep.subr.bf16.mxu0 0
        %1425 = vmatpush1.bf16.msra.mxu0 0
        %1426 = vmatprep.subr.bf16.mxu0 0
        %1427 = vmatpush1.bf16.msra.mxu0 0
        %1428 = vmatprep.subr.bf16.mxu0 0
        %1429 = vmatpush1.bf16.msra.mxu0 0
        %1430 = vmatprep.subr.bf16.mxu0 0
        %1431 = vmatpush1.bf16.msra.mxu0 0
        %1432 = vmatprep.mubr.bf16.mxu0 0
        %1433 = vmatmul.mubr.bf16.gmra.mrb[0].mxu0 %v1395
        %v1434 = vpop.f32.mrb[0].mxu0
        %v1435 = vadd.f32 %v1388, %v1434
        %v1436 = vpop.f32.mrb[0].mxu0
        %v1437 = vpop.f32.mrb[0].mxu0
        %v1438 = vpop.f32.mrb[0].mxu0
        %1439 = vdwg.mxu0
        %v1440 = vld [vmem:[%s1174] sm:$0xf]
        %v1441 = vunpack.c.l.bf16 %v1440
        %v1442 = vmul.f32 %v1372, %v1441
        %v1443 = vsel %vm779, %v1442, 0.0
        %1444 = vadd.xlane.f32.xlu0 %v1443
        %v1445 = vpop.xlane.xlu0 %1444
        %v1446 = vlaneseq
        %v1447 = vshrl.u32 %v1446, 7
        %v1448 = vsub.s32 1, %v1447
        %v1449 = vrot.slane %v1377, %v1448
        %v1450 = vmul.f32 %v1445, %v1449
        %v1451 = vadd.f32 %v1435, %v1450
        %1453 = vrot.lane.b32.xlu0 %v1451, 8
        %v1454 = vpop.permute.xlu0 %1453
        %1456 = vst.msk [vmem:[#allocation3] sm:$0xff] %vm1013, %v1454
        %v1457 = vld [vmem:[#allocation3] sm:$0xff]
        %v1458 = vpack.c.bf16 %v1457, %v1457
        %v1459 = vld [vmem:[#allocation15] sm:$0xf]
        %v1460 = vld [vmem:[#allocation15 + $0x4] sm:$0xf]
        %v1463 = vunpack.c.l.b16 %v1459
        %v1464 = vunpack.c.l.b16 %v1460
        %v1465 = vpack.c.b16 %v1464, %v1463
        %v1468 = vsel %vm1025, %v1458, 0
        %1470 = vmatprep.subr.bf16.mxu0 0
        %1471 = vmatpush1.bf16.msra.mxu0 %v1465
        %1472 = vmatprep.subr.bf16.mxu0 0
        %1473 = vmatpush1.bf16.msra.mxu0 0
        %1474 = vmatprep.subr.bf16.mxu0 0
        %1475 = vmatpush1.bf16.msra.mxu0 0
        %1476 = vmatprep.subr.bf16.mxu0 0
        %1477 = vmatpush1.bf16.msra.mxu0 0
        %1478 = vmatprep.subr.bf16.mxu0 0
        %1479 = vmatpush1.bf16.msra.mxu0 0
        %1480 = vmatprep.subr.bf16.mxu0 0
        %1481 = vmatpush1.bf16.msra.mxu0 0
        %1482 = vmatprep.subr.bf16.mxu0 0
        %1483 = vmatpush1.bf16.msra.mxu0 0
        %1484 = vmatprep.subr.bf16.mxu0 0
        %1485 = vmatpush1.bf16.msra.mxu0 0
        %1486 = vmatprep.subr.bf16.mxu0 0
        %1487 = vmatpush1.bf16.msra.mxu0 0
        %1488 = vmatprep.subr.bf16.mxu0 0
        %1489 = vmatpush1.bf16.msra.mxu0 0
        %1490 = vmatprep.subr.bf16.mxu0 0
        %1491 = vmatpush1.bf16.msra.mxu0 0
        %1492 = vmatprep.subr.bf16.mxu0 0
        %1493 = vmatpush1.bf16.msra.mxu0 0
        %1494 = vmatprep.subr.bf16.mxu0 0
        %1495 = vmatpush1.bf16.msra.mxu0 0
        %1496 = vmatprep.subr.bf16.mxu0 0
        %1497 = vmatpush1.bf16.msra.mxu0 0
        %1498 = vmatprep.subr.bf16.mxu0 0
        %1499 = vmatpush1.bf16.msra.mxu0 0
        %1500 = vmatprep.subr.bf16.mxu0 0
        %1501 = vmatpush1.bf16.msra.mxu0 0
        %1502 = vmatprep.mubr.bf16.mxu0 0
        %1503 = vmatmul.mubr.bf16.gmra.mrb[0].mxu0 %v1468
        %v1504 = vpop.f32.mrb[0].mxu0
        %v1505 = vadd.f32 0.0, %v1504
        %v1506 = vpop.f32.mrb[0].mxu0
        %v1507 = vpop.f32.mrb[0].mxu0
        %v1508 = vpop.f32.mrb[0].mxu0
        %1509 = vdwg.mxu0
        %1510 = vst.msk [vmem:[%s733] sm:$0xff] %vm1025, %v1064
        %1512 = vrot.lane.b32.xlu0 %v1505, 16
        %v1513 = vpop.permute.xlu0 %1512
        %vm1515 = vcmask 261248
        %1516 = vst.msk [vmem:[%s733] sm:$0xff] %vm1515, %v1513
        %s1517 = sand.u32 %s344, 1
        %s1518 = scalar_lea.sflag [#allocation6], %s1517
        %s1519 = sand.u32 %s344, 1
        %s1520 = smul.addr %s1519, 8
        %s1521 = scalar_lea.vmem [#allocation16], %s1520
        %s1522 = sand.u32 %s45, 1
        %s1523 = scalar_lea.sflag [#allocation18], %s1522
        %s1524 = sand.u32 %s372, 1
        %s1525 = smul.addr %s1524, 8
        %s1526 = scalar_lea.vmem [#allocation17], %s1525
        %s1527 = sand.u32 %s45, 1
        %s1528 = scalar_lea.sflag [#allocation18], %s1527
        %s1529 = sand.u32 %s400, 1
        %s1530 = smul.addr %s1529, 8
        %s1531 = scalar_lea.vmem [#allocation19], %s1530
        %s1532 = sand.u32 %s428, 1
        %s1533 = scalar_lea.sflag [#allocation21], %s1532
        %s1534 = sand.u32 %s428, 1
        %s1535 = smul.addr %s1534, 8
        %s1536 = scalar_lea.vmem [#allocation20], %s1535
        // Predicated region
        $region93: #{tpu_custom_call.1} parent=63 // pred_check
          %p1537 = pneg %p354
        $region94: #{tpu_custom_call.1} parent=63 // pred_check_branch
          %1539 = sbr.rel (%p1537) target = $region96
        $region95: #{tpu_custom_call.1} parent=63 // pred_region
          %s1541 = ssub.s32 128, 128
          %1542 = vsyncadd %s1518, %s1541
          %s1543 = sadd.s32 %s50, %s49
          %s1544 = smul.addr %s1543, 128
          %s1545 = scalar_lea.hbm %s11, %s1544
          %s1547 = sshll.u32 %s1521, 4
          %s1548 = int_to_ptr.vmem [resolvable:$true] %s1547
          %1550 = dma.vmem_to_hbm [thread:$0]  %s1548, 128, %s1545, %s1518
        $region96: #{tpu_custom_call.1} parent=63 // pred_fallthru
          _
        // Predicated region
        $region97: #{tpu_custom_call.1} parent=63 // pred_check
          %p1551 = pneg %p382
        $region98: #{tpu_custom_call.1} parent=63 // pred_check_branch
          %1553 = sbr.rel (%p1551) target = $region100
        $region99: #{tpu_custom_call.1} parent=63 // pred_region
          %s1555 = ssub.s32 128, 128
          %1556 = vsyncadd %s1523, %s1555
          %s1557 = smul.addr %s49, 2
          %s1558 = sadd.s32 %s50, %s1557
          %s1559 = smul.addr %s1558, 64
          %s1560 = scalar_lea.hbm %s12, %s1559
          %s1561 = sshll.u32 %s1526, 4
          %s1562 = int_to_ptr.vmem [resolvable:$true] %s1561
          %1567 = dma.vmem_to_hbm [thread:$0]  %s1562, 128, %s1560, %s1523, 64, 64, 4
        $region100: #{tpu_custom_call.1} parent=63 // pred_fallthru
          _
        // Predicated region
        $region101: #{tpu_custom_call.1} parent=63 // pred_check
          %p1568 = pneg %p410
        $region102: #{tpu_custom_call.1} parent=63 // pred_check_branch
          %1570 = sbr.rel (%p1568) target = $region104
        $region103: #{tpu_custom_call.1} parent=63 // pred_region
          %s1572 = ssub.s32 128, 128
          %1573 = vsyncadd %s1528, %s1572
          %s1574 = smul.addr %s49, 2
          %s1575 = sadd.s32 %s50, %s1574
          %s1576 = smul.addr %s1575, 64
          %s1577 = scalar_lea.hbm %s13, %s1576
          %s1578 = sshll.u32 %s1531, 4
          %s1579 = int_to_ptr.vmem [resolvable:$true] %s1578
          %1584 = dma.vmem_to_hbm [thread:$0]  %s1579, 128, %s1577, %s1528, 64, 64, 4
        $region104: #{tpu_custom_call.1} parent=63 // pred_fallthru
          _
        // Predicated region
        $region105: #{tpu_custom_call.1} parent=63 // pred_check
          %p1585 = pneg %p438
        $region106: #{tpu_custom_call.1} parent=63 // pred_check_branch
          %1587 = sbr.rel (%p1585) target = $region108
        $region107: #{tpu_custom_call.1} parent=63 // pred_region
          %s1589 = ssub.s32 128, 128
          %1590 = vsyncadd %s1533, %s1589
          %s1591 = smul.addr %s49, 2
          %s1592 = sadd.s32 %s50, %s1591
          %s1593 = smul.addr %s1592, 64
          %s1594 = scalar_lea.hbm %s14, %s1593
          %s1595 = sshll.u32 %s1536, 4
          %s1596 = int_to_ptr.vmem [resolvable:$true] %s1595
          %1601 = dma.vmem_to_hbm [thread:$0]  %s1596, 128, %s1594, %s1533, 64, 64, 4
        $region108: #{tpu_custom_call.1} parent=63 // pred_fallthru
          _
      $region64: #{tpu_custom_call.1} parent=5 // pred_fallthru
        _
      %p1602 = scmp.le.s32.totalorder 2, %s40
      // Predicated region
      $region109: #{tpu_custom_call.1} parent=5 // pred_check
        %p1603 = pneg %p1602
      $region110: #{tpu_custom_call.1} parent=5 // pred_check_branch
        %1605 = sbr.rel (%p1603) target = $region112
      $region111: #{tpu_custom_call.1} parent=5 // pred_region
        %s1606 = ssub.s32 %s40, 2
        // Predicated region
        $region113: #{tpu_custom_call.1} parent=111 // pred_check
          %p1607 = pneg %p360
        $region114: #{tpu_custom_call.1} parent=111 // pred_check_branch
          %1609 = sbr.rel (%p1607) target = $region116
        $region115: #{tpu_custom_call.1} parent=111 // pred_region
          %s1610 = sand.u32 %s345, 1
          %s1611 = scalar_lea.sflag [#allocation6], %s1610
          %s1612 = sand.u32 %s345, 1
          %s1613 = smul.addr %s1612, 8
          %s1614 = scalar_lea.vmem [#allocation16], %s1613
          %1615 = dma.done %s1611, 128
        $region116: #{tpu_custom_call.1} parent=111 // pred_fallthru
          _
        // Predicated region
        $region117: #{tpu_custom_call.1} parent=111 // pred_check
          %p1616 = pneg %p388
        $region118: #{tpu_custom_call.1} parent=111 // pred_check_branch
          %1618 = sbr.rel (%p1616) target = $region120
        $region119: #{tpu_custom_call.1} parent=111 // pred_region
          %s1619 = sand.u32 %s46, 1
          %s1620 = scalar_lea.sflag [#allocation18], %s1619
          %s1621 = sand.u32 %s373, 1
          %s1622 = smul.addr %s1621, 8
          %s1623 = scalar_lea.vmem [#allocation17], %s1622
          %1624 = dma.done %s1620, 128
        $region120: #{tpu_custom_call.1} parent=111 // pred_fallthru
          _
        // Predicated region
        $region121: #{tpu_custom_call.1} parent=111 // pred_check
          %p1625 = pneg %p416
        $region122: #{tpu_custom_call.1} parent=111 // pred_check_branch
          %1627 = sbr.rel (%p1625) target = $region124
        $region123: #{tpu_custom_call.1} parent=111 // pred_region
          %s1628 = sand.u32 %s46, 1
          %s1629 = scalar_lea.sflag [#allocation18], %s1628
          %s1630 = sand.u32 %s401, 1
          %s1631 = smul.addr %s1630, 8
          %s1632 = scalar_lea.vmem [#allocation19], %s1631
          %1633 = dma.done %s1629, 128
        $region124: #{tpu_custom_call.1} parent=111 // pred_fallthru
          _
        // Predicated region
        $region125: #{tpu_custom_call.1} parent=111 // pred_check
          %p1634 = pneg %p444
        $region126: #{tpu_custom_call.1} parent=111 // pred_check_branch
          %1636 = sbr.rel (%p1634) target = $region128
        $region127: #{tpu_custom_call.1} parent=111 // pred_region
          %s1637 = sand.u32 %s429, 1
          %s1638 = scalar_lea.sflag [#allocation21], %s1637
          %s1639 = sand.u32 %s429, 1
          %s1640 = smul.addr %s1639, 8
          %s1641 = scalar_lea.vmem [#allocation20], %s1640
          %1642 = dma.done %s1638, 128
        $region128: #{tpu_custom_call.1} parent=111 // pred_fallthru
          _
      $region112: #{tpu_custom_call.1} parent=5 // pred_fallthru
        _
    $region6: #{tpu_custom_call.1} parent=1 // loop_footer
      %s44 = sadd.s32 1, %s40
    $region7: #{tpu_custom_call.1} parent=1 // loop_footer_branch
      %39 = sbr.rel target = $region3
    $region8: #{tpu_custom_call.1} parent=1 // loop_exit
      _
    %1643 = vsyncpa [#allocation5], 1
    %s1644 = scalar_lea.sflag [#allocation5], 1
    %1645 = vsyncpa %s1644, 1
    %1646 = vsyncpa [#allocation8], 1
    %s1647 = scalar_lea.sflag [#allocation8], 1
    %1648 = vsyncpa %s1647, 1
    %1649 = vsyncpa [#allocation11], 1
    %s1650 = scalar_lea.sflag [#allocation11], 1
    %1651 = vsyncpa %s1650, 1
    %1652 = vsyncpa [#allocation14], 1
    %1653 = vsyncpa [#allocation6], 1
    %s1654 = scalar_lea.sflag [#allocation6], 1
    %1655 = vsyncpa %s1654, 1
    %1656 = vsyncpa [#allocation18], 1
    %s1657 = scalar_lea.sflag [#allocation18], 1
    %1658 = vsyncpa %s1657, 1
    %1659 = vsyncpa [#allocation21], 1
    %s1660 = scalar_lea.sflag [#allocation21], 1
    %1661 = vsyncpa %s1660, 1

</llo_original>
